<compile_context>
chip_gen: v6e
topology: v6e:2x2x1
jax: 0.10.0
libtpu: 0.0.40
codegen_flags: <defaults>
</compile_context>

<pallas_src>
import functools

import jax
import jax.numpy as jnp
from jax.experimental import pallas as pl
from jax.experimental.pallas import tpu as pltpu


# --------------------------------------------------------------------------- #
# Kernels
# --------------------------------------------------------------------------- #
def _im2col_conv(x_ref, w_ref, patch_ref, *, th, W, Cin):
    """Fused-K 3x3/pad=1 conv for one (th, W) tile.

    x_ref:     (H+2, W+2, Cin) bf16   zero-padded NHWC image (resident per n)
    w_ref:     (9*Cin, Cout_pad) bf16 fused weight, (kh, kw, cin)-major rows
    patch_ref: (th, W, 9*Cin) bf16    VMEM im2col staging buffer
    returns    (th*W, Cout_pad) f32
    """
    row0 = pl.program_id(1) * th
    for kh in range(3):
        for kw in range(3):
            piece = x_ref[pl.ds(row0 + kh, th), pl.ds(kw, W), :]      # (th, W, Cin)
            k = kh * 3 + kw
            patch_ref[:, :, k * Cin:(k + 1) * Cin] = piece
    patches = patch_ref[...].reshape(th * W, 9 * Cin)                 # W % 8 == 0
    return jnp.dot(patches, w_ref[...], preferred_element_type=jnp.float32)


def _conv_relu_stats_kernel(x_ref, w_ref, y_ref, stat_ref, patch_ref, *,
                            th, W, Cin, Cout, Cout_pad):
    """Pass 1 (hidden layer): conv + ReLU, bf16 channel-dense y, partial BN stats."""
    acc = _im2col_conv(x_ref, w_ref, patch_ref, th=th, W=W, Cin=Cin)
    y = jnp.maximum(acc, 0.0)                                         # (th*W, Cout_pad) f32

    # Per-tile partial statistics: row 0 = sum(y), row 1 = sum(y*y) over tile pixels.
    s = jnp.sum(y, axis=0, keepdims=True)                             # (1, Cout_pad)
    q = jnp.sum(y * y, axis=0, keepdims=True)                         # (1, Cout_pad)
    rows = jax.lax.broadcasted_iota(jnp.int32, (8, Cout_pad), 0)
    stat_ref[...] = jnp.where(rows == 0, s, jnp.where(rows == 1, q, 0.0))

    # Channel-major, lane-dense bf16 activation: (Cout, th*W).
    y_ref[...] = jnp.transpose(y)[:Cout, :].astype(jnp.bfloat16)


def _bn_apply_kernel(y_ref, scale_ref, shift_ref, o_ref):
    """Pass 2: pure mem-bound y*scale + shift stream (scale/shift precomputed)."""
    o_ref[...] = y_ref[...].astype(jnp.float32) * scale_ref[...] + shift_ref[...]


def _conv_sigmoid_kernel(x_ref, w_ref, b_ref, o_ref, patch_ref, *,
                         th, W, Cin, Cout, Cout_pad):
    """Output layer: conv + bias + sigmoid (EUP exp + approximate reciprocal)."""
    acc = _im2col_conv(x_ref, w_ref, patch_ref, th=th, W=W, Cin=Cin) + b_ref[...]
    sig = pl.reciprocal(1.0 + jnp.exp(-acc), approx=True)             # EUP slots, VALU-free
    o_ref[...] = jnp.transpose(sig)[:Cout, :]                         # (Cout, th*W) f32


# --------------------------------------------------------------------------- #
# Wrapper (matches nn.Conv2d(3x3, pad=1, bias=is_output) -> act -> BatchNorm2d)
# --------------------------------------------------------------------------- #
def conv2d_layer(x_nchw, weight, bias=None, gamma=None, beta=None, *,
                 is_output, eps=1e-5, block_h=None):
    """Forward of _Conv2DLayer.

    x_nchw: (N, Cin, H, W) f32.
    is_output=False: conv(bias=False) -> ReLU -> BatchNorm2d with batch statistics
                     (training-mode normalization; running-stat buffers not modeled).
    is_output=True : conv(bias)       -> Sigmoid.
    Returns (N, Cout, H, W) f32.
    """
    N, Cin, H, W = x_nchw.shape
    Cout = weight.shape[0]
    assert W % 8 == 0, "W must be a multiple of 8 (pad spatially if needed)"
    Cout_pad = ((Cout + 127) // 128) * 128
    HW = H * W

    if block_h is None:
        cands = [t for t in range(1, H + 1)
                 if H % t == 0 and ((t * W) % 128 == 0 or t == H)]
        good = [t for t in cands if t * W <= 512]      # keep f32 acc tile register-sized
        th = max(good) if good else min(cands)
    else:
        th = block_h
    assert H % th == 0, "block_h must divide H"
    assert (th * W) % 128 == 0 or th == H, "tile must be lane-dense (th*W % 128 == 0)"
    T = H // th

    # ---- glue (XLA): NCHW -> zero-padded NHWC bf16; fused (kh,kw,cin)-major weight ----
    # TODO(synk): fold pad/transpose/cast into pass 1 and accept NHWC across layers to
    # save the extra HBM passes over x done here by XLA.
    xp = jnp.pad(jnp.transpose(x_nchw, (0, 2, 3, 1)),
                 ((0, 0), (1, 1), (1, 1), (0, 0))).astype(jnp.bfloat16)
    wf = jnp.transpose(weight, (2, 3, 1, 0)).reshape(9 * Cin, Cout)
    wf = jnp.pad(wf, ((0, 0), (0, Cout_pad - Cout))).astype(jnp.bfloat16)

    x_spec = pl.BlockSpec((None, H + 2, W + 2, Cin), lambda n, t: (n, 0, 0, 0))
    w_spec = pl.BlockSpec((9 * Cin, Cout_pad), lambda n, t: (0, 0))
    y_spec = pl.BlockSpec((None, Cout, th * W), lambda n, t: (n, 0, t))
    scratch = [pltpu.VMEM((th, W, 9 * Cin), jnp.bfloat16)]
    cp = pltpu.CompilerParams(dimension_semantics=("parallel", "parallel"),
                              vmem_limit_bytes=32 * 1024 * 1024)

    if is_output:
        b2 = jnp.pad(bias.astype(jnp.float32).reshape(1, Cout),
                     ((0, 0), (0, Cout_pad - Cout)))
        out = pl.pallas_call(
            functools.partial(_conv_sigmoid_kernel, th=th, W=W, Cin=Cin,
                              Cout=Cout, Cout_pad=Cout_pad),
            grid=(N, T),
            in_specs=[x_spec, w_spec,
                      pl.BlockSpec((1, Cout_pad), lambda n, t: (0, 0))],
            out_specs=y_spec,
            out_shape=jax.ShapeDtypeStruct((N, Cout, HW), jnp.float32),
            scratch_shapes=scratch,
            compiler_params=cp,
        )(xp, wf, b2)
        return out.reshape(N, Cout, H, W)

    # ---- pass 1: conv + ReLU -> bf16 channel-dense y + per-tile BN partials ----
    stat_spec = pl.BlockSpec((None, 8, Cout_pad), lambda n, t: (n, t, 0))
    y_bf16, stats = pl.pallas_call(
        functools.partial(_conv_relu_stats_kernel, th=th, W=W, Cin=Cin,
                          Cout=Cout, Cout_pad=Cout_pad),
        grid=(N, T),
        in_specs=[x_spec, w_spec],
        out_specs=[y_spec, stat_spec],
        out_shape=[jax.ShapeDtypeStruct((N, Cout, HW), jnp.bfloat16),
                   jax.ShapeDtypeStruct((N, T * 8, Cout_pad), jnp.float32)],
        scratch_shapes=scratch,
        compiler_params=cp,
    )(xp, wf)

    # ---- tiny O(Cout) finalization in plain JAX: batch stats -> scale/shift ----
    stats = stats.reshape(N, T, 8, Cout_pad)
    s = jnp.sum(stats[:, :, 0, :Cout], axis=(0, 1))
    q = jnp.sum(stats[:, :, 1, :Cout], axis=(0, 1))
    cnt = float(N * HW)
    mean = s / cnt
    # TODO(synk): E[y^2]-E[y]^2 can cancel in f32 at production N*H*W; switch to a
    # centered second pass / Welford-style tile merge if deployed at real sizes.
    var = jnp.maximum(q / cnt - mean * mean, 0.0)
    scale = gamma.astype(jnp.float32) * jax.lax.rsqrt(var + eps)
    shift = beta.astype(jnp.float32) - mean * scale
    scale = scale.reshape(Cout, 1)
    shift = shift.reshape(Cout, 1)

    # ---- pass 2: mem-bound normalize stream, channel-dense f32 output ----
    sc_spec = pl.BlockSpec((Cout, 1), lambda n, t: (0, 0))
    out = pl.pallas_call(
        _bn_apply_kernel,
        grid=(N, T),
        in_specs=[y_spec, sc_spec, sc_spec],
        out_specs=y_spec,
        out_shape=jax.ShapeDtypeStruct((N, Cout, HW), jnp.float32),
        compiler_params=cp,
    )(y_bf16, scale, shift)
    return out.reshape(N, Cout, H, W)


# --------------------------------------------------------------------------- #
# Pure-JAX reference of the PyTorch forward (mirrors the kernel's mixed precision:
# bf16 matmul operands, f32 accumulation/stats, bf16 intermediate activation).
# --------------------------------------------------------------------------- #
def _reference(x, weight, bias, gamma, beta, is_output, eps=1e-5):
    y = jax.lax.conv_general_dilated(
        x.astype(jnp.bfloat16), weight.astype(jnp.bfloat16),
        window_strides=(1, 1), padding=((1, 1), (1, 1)),
        dimension_numbers=("NCHW", "OIHW", "NCHW"),
        preferred_element_type=jnp.float32)
    if is_output:
        y = y + bias.reshape(1, -1, 1, 1)
        return jax.nn.sigmoid(y)
    y = jnp.maximum(y, 0.0)
    mean = jnp.mean(y, axis=(0, 2, 3), keepdims=True)
    var = jnp.mean(y * y, axis=(0, 2, 3), keepdims=True) - mean * mean
    yq = y.astype(jnp.bfloat16).astype(jnp.float32)   # kernel stores y in bf16
    return ((yq - mean) * jax.lax.rsqrt(var + eps) * gamma.reshape(1, -1, 1, 1)
            + beta.reshape(1, -1, 1, 1))


if __name__ == "__main__":
    key = jax.random.PRNGKey(0)
    k1, k2, k3, k4, k5 = jax.random.split(key, 5)

    N, Cin, H, W, Cout = 2, 4, 16, 16, 8
    x = jax.random.normal(k1, (N, Cin, H, W), jnp.float32)
    w = 0.1 * jax.random.normal(k2, (Cout, Cin, 3, 3), jnp.float32)
    gamma = 1.0 + 0.1 * jax.random.normal(k3, (Cout,), jnp.float32)
    beta = 0.1 * jax.random.normal(k4, (Cout,), jnp.float32)
    out_bias = 0.1 * jax.random.normal(k5, (Cout,), jnp.float32)

    # is_output=False: conv(bias=False) -> ReLU -> BatchNorm2d (batch statistics).
    # block_h=8 forces a (2, 2) grid and exercises multi-tile partial statistics.
    out_hidden = jax.block_until_ready(
        conv2d_layer(x, w, None, gamma, beta, is_output=False, block_h=8))
    ref_hidden = _reference(x, w, None, gamma, beta, False)
    assert out_hidden.shape == (N, Cout, H, W)
    assert jnp.allclose(out_hidden, ref_hidden, atol=3e-3, rtol=3e-3), (
        float(jnp.max(jnp.abs(out_hidden - ref_hidden))))

    # is_output=True: conv(with bias) -> Sigmoid (approximate EUP reciprocal epilogue).
    out_final = jax.block_until_ready(
        conv2d_layer(x, w, out_bias, None, None, is_output=True, block_h=8))
    ref_final = _reference(x, w, out_bias, None, None, True)
    assert out_final.shape == (N, Cout, H, W)
    assert jnp.allclose(out_final, ref_final, atol=5e-3, rtol=5e-3), (
        float(jnp.max(jnp.abs(out_final - ref_final))))

    print("KERNEL_OK")
</pallas_src>

<mosaic_0001>
module attributes {stable_mosaic.version = 11 : i64} {
  func.func @_conv_relu_stats_kernel(%arg0: i32, %arg1: i32, %arg2: memref<1x18x18x4xbf16, #tpu.memory_space<vmem>>, %arg3: memref<36x128xbf16, #tpu.memory_space<vmem>>, %arg4: memref<1x8x128xbf16, #tpu.memory_space<vmem>>, %arg5: memref<1x8x128xf32, #tpu.memory_space<vmem>>, %arg6: memref<8x16x36xbf16, #tpu.memory_space<vmem>>) attributes {dimension_semantics = [#tpu.dimension_semantics<parallel>, #tpu.dimension_semantics<parallel>], iteration_bounds = array<i64: 2, 2>, scalar_prefetch = 0 : i64, scratch_operands = 1 : i64, tpu.core_type = #tpu.core_type<tc>, window_params = [{transform_indices = @transform_0, window_bounds = array<i64: 1, 18, 18, 4>}, {pipeline_mode = #tpu.pipeline_mode<synchronous>, transform_indices = @transform_1, window_bounds = array<i64: 36, 128>}, {transform_indices = @transform_2, window_bounds = array<i64: 1, 8, 128>}, {transform_indices = @transform_3, window_bounds = array<i64: 1, 8, 128>}]} {
    %c8_i32 = arith.constant 8 : i32
    %0 = arith.muli %arg1, %c8_i32 : i32
    %c0_i32 = arith.constant 0 : i32
    %1 = arith.addi %0, %c0_i32 : i32
    %c0 = arith.constant 0 : index
    %2 = arith.index_cast %1 : i32 to index
    %c0_0 = arith.constant 0 : index
    %c0_1 = arith.constant 0 : index
    %3 = vector.load %arg2[%c0, %2, %c0_0, %c0_1] : memref<1x18x18x4xbf16, #tpu.memory_space<vmem>>, vector<1x8x16x4xbf16>
    %4 = vector.shape_cast %3 : vector<1x8x16x4xbf16> to vector<8x16x4xbf16>
    %c0_2 = arith.constant 0 : index
    %c0_3 = arith.constant 0 : index
    %c0_4 = arith.constant 0 : index
    %5 = vector.load %arg6[%c0_2, %c0_3, %c0_4] : memref<8x16x36xbf16, #tpu.memory_space<vmem>>, vector<8x16x4xbf16>
    tpu.vector_store %arg6[%c0_2, %c0_3, %c0_4], %4 {strides = array<i32>} : memref<8x16x36xbf16, #tpu.memory_space<vmem>>, vector<8x16x4xbf16>,
    %c0_i32_5 = arith.constant 0 : i32
    %6 = arith.addi %0, %c0_i32_5 : i32
    %c0_6 = arith.constant 0 : index
    %7 = arith.index_cast %6 : i32 to index
    %c1 = arith.constant 1 : index
    %c0_7 = arith.constant 0 : index
    %8 = vector.load %arg2[%c0_6, %7, %c1, %c0_7] : memref<1x18x18x4xbf16, #tpu.memory_space<vmem>>, vector<1x8x16x4xbf16>
    %9 = vector.shape_cast %8 : vector<1x8x16x4xbf16> to vector<8x16x4xbf16>
    %c0_8 = arith.constant 0 : index
    %c0_9 = arith.constant 0 : index
    %c4 = arith.constant 4 : index
    %10 = vector.load %arg6[%c0_8, %c0_9, %c4] : memref<8x16x36xbf16, #tpu.memory_space<vmem>>, vector<8x16x4xbf16>
    tpu.vector_store %arg6[%c0_8, %c0_9, %c4], %9 {strides = array<i32>} : memref<8x16x36xbf16, #tpu.memory_space<vmem>>, vector<8x16x4xbf16>,
    %c0_i32_10 = arith.constant 0 : i32
    %11 = arith.addi %0, %c0_i32_10 : i32
    %c0_11 = arith.constant 0 : index
    %12 = arith.index_cast %11 : i32 to index
    %c2 = arith.constant 2 : index
    %c0_12 = arith.constant 0 : index
    %13 = vector.load %arg2[%c0_11, %12, %c2, %c0_12] : memref<1x18x18x4xbf16, #tpu.memory_space<vmem>>, vector<1x8x16x4xbf16>
    %14 = vector.shape_cast %13 : vector<1x8x16x4xbf16> to vector<8x16x4xbf16>
    %c0_13 = arith.constant 0 : index
    %c0_14 = arith.constant 0 : index
    %c8 = arith.constant 8 : index
    %15 = vector.load %arg6[%c0_13, %c0_14, %c8] : memref<8x16x36xbf16, #tpu.memory_space<vmem>>, vector<8x16x4xbf16>
    tpu.vector_store %arg6[%c0_13, %c0_14, %c8], %14 {strides = array<i32>} : memref<8x16x36xbf16, #tpu.memory_space<vmem>>, vector<8x16x4xbf16>,
    %c1_i32 = arith.constant 1 : i32
    %16 = arith.addi %0, %c1_i32 : i32
    %c0_15 = arith.constant 0 : index
    %17 = arith.index_cast %16 : i32 to index
    %c0_16 = arith.constant 0 : index
    %c0_17 = arith.constant 0 : index
    %18 = vector.load %arg2[%c0_15, %17, %c0_16, %c0_17] : memref<1x18x18x4xbf16, #tpu.memory_space<vmem>>, vector<1x8x16x4xbf16>
    %19 = vector.shape_cast %18 : vector<1x8x16x4xbf16> to vector<8x16x4xbf16>
    %c0_18 = arith.constant 0 : index
    %c0_19 = arith.constant 0 : index
    %c12 = arith.constant 12 : index
    %20 = vector.load %arg6[%c0_18, %c0_19, %c12] : memref<8x16x36xbf16, #tpu.memory_space<vmem>>, vector<8x16x4xbf16>
    tpu.vector_store %arg6[%c0_18, %c0_19, %c12], %19 {strides = array<i32>} : memref<8x16x36xbf16, #tpu.memory_space<vmem>>, vector<8x16x4xbf16>,
    %c1_i32_20 = arith.constant 1 : i32
    %21 = arith.addi %0, %c1_i32_20 : i32
    %c0_21 = arith.constant 0 : index
    %22 = arith.index_cast %21 : i32 to index
    %c1_22 = arith.constant 1 : index
    %c0_23 = arith.constant 0 : index
    %23 = vector.load %arg2[%c0_21, %22, %c1_22, %c0_23] : memref<1x18x18x4xbf16, #tpu.memory_space<vmem>>, vector<1x8x16x4xbf16>
    %24 = vector.shape_cast %23 : vector<1x8x16x4xbf16> to vector<8x16x4xbf16>
    %c0_24 = arith.constant 0 : index
    %c0_25 = arith.constant 0 : index
    %c16 = arith.constant 16 : index
    %25 = vector.load %arg6[%c0_24, %c0_25, %c16] : memref<8x16x36xbf16, #tpu.memory_space<vmem>>, vector<8x16x4xbf16>
    tpu.vector_store %arg6[%c0_24, %c0_25, %c16], %24 {strides = array<i32>} : memref<8x16x36xbf16, #tpu.memory_space<vmem>>, vector<8x16x4xbf16>,
    %c1_i32_26 = arith.constant 1 : i32
    %26 = arith.addi %0, %c1_i32_26 : i32
    %c0_27 = arith.constant 0 : index
    %27 = arith.index_cast %26 : i32 to index
    %c2_28 = arith.constant 2 : index
    %c0_29 = arith.constant 0 : index
    %28 = vector.load %arg2[%c0_27, %27, %c2_28, %c0_29] : memref<1x18x18x4xbf16, #tpu.memory_space<vmem>>, vector<1x8x16x4xbf16>
    %29 = vector.shape_cast %28 : vector<1x8x16x4xbf16> to vector<8x16x4xbf16>
    %c0_30 = arith.constant 0 : index
    %c0_31 = arith.constant 0 : index
    %c20 = arith.constant 20 : index
    %30 = vector.load %arg6[%c0_30, %c0_31, %c20] : memref<8x16x36xbf16, #tpu.memory_space<vmem>>, vector<8x16x4xbf16>
    tpu.vector_store %arg6[%c0_30, %c0_31, %c20], %29 {strides = array<i32>} : memref<8x16x36xbf16, #tpu.memory_space<vmem>>, vector<8x16x4xbf16>,
    %c2_i32 = arith.constant 2 : i32
    %31 = arith.addi %0, %c2_i32 : i32
    %c0_32 = arith.constant 0 : index
    %32 = arith.index_cast %31 : i32 to index
    %c0_33 = arith.constant 0 : index
    %c0_34 = arith.constant 0 : index
    %33 = vector.load %arg2[%c0_32, %32, %c0_33, %c0_34] : memref<1x18x18x4xbf16, #tpu.memory_space<vmem>>, vector<1x8x16x4xbf16>
    %34 = vector.shape_cast %33 : vector<1x8x16x4xbf16> to vector<8x16x4xbf16>
    %c0_35 = arith.constant 0 : index
    %c0_36 = arith.constant 0 : index
    %c24 = arith.constant 24 : index
    %35 = vector.load %arg6[%c0_35, %c0_36, %c24] : memref<8x16x36xbf16, #tpu.memory_space<vmem>>, vector<8x16x4xbf16>
    tpu.vector_store %arg6[%c0_35, %c0_36, %c24], %34 {strides = array<i32>} : memref<8x16x36xbf16, #tpu.memory_space<vmem>>, vector<8x16x4xbf16>,
    %c2_i32_37 = arith.constant 2 : i32
    %36 = arith.addi %0, %c2_i32_37 : i32
    %c0_38 = arith.constant 0 : index
    %37 = arith.index_cast %36 : i32 to index
    %c1_39 = arith.constant 1 : index
    %c0_40 = arith.constant 0 : index
    %38 = vector.load %arg2[%c0_38, %37, %c1_39, %c0_40] : memref<1x18x18x4xbf16, #tpu.memory_space<vmem>>, vector<1x8x16x4xbf16>
    %39 = vector.shape_cast %38 : vector<1x8x16x4xbf16> to vector<8x16x4xbf16>
    %c0_41 = arith.constant 0 : index
    %c0_42 = arith.constant 0 : index
    %c28 = arith.constant 28 : index
    %40 = vector.load %arg6[%c0_41, %c0_42, %c28] : memref<8x16x36xbf16, #tpu.memory_space<vmem>>, vector<8x16x4xbf16>
    tpu.vector_store %arg6[%c0_41, %c0_42, %c28], %39 {strides = array<i32>} : memref<8x16x36xbf16, #tpu.memory_space<vmem>>, vector<8x16x4xbf16>,
    %c2_i32_43 = arith.constant 2 : i32
    %41 = arith.addi %0, %c2_i32_43 : i32
    %c0_44 = arith.constant 0 : index
    %42 = arith.index_cast %41 : i32 to index
    %c2_45 = arith.constant 2 : index
    %c0_46 = arith.constant 0 : index
    %43 = vector.load %arg2[%c0_44, %42, %c2_45, %c0_46] : memref<1x18x18x4xbf16, #tpu.memory_space<vmem>>, vector<1x8x16x4xbf16>
    %44 = vector.shape_cast %43 : vector<1x8x16x4xbf16> to vector<8x16x4xbf16>
    %c0_47 = arith.constant 0 : index
    %c0_48 = arith.constant 0 : index
    %c32 = arith.constant 32 : index
    %45 = vector.load %arg6[%c0_47, %c0_48, %c32] : memref<8x16x36xbf16, #tpu.memory_space<vmem>>, vector<8x16x4xbf16>
    tpu.vector_store %arg6[%c0_47, %c0_48, %c32], %44 {strides = array<i32>} : memref<8x16x36xbf16, #tpu.memory_space<vmem>>, vector<8x16x4xbf16>,
    %c0_49 = arith.constant 0 : index
    %c0_50 = arith.constant 0 : index
    %c0_51 = arith.constant 0 : index
    %46 = vector.load %arg6[%c0_49, %c0_50, %c0_51] : memref<8x16x36xbf16, #tpu.memory_space<vmem>>, vector<8x16x36xbf16>
    %47 = vector.shape_cast %46 : vector<8x16x36xbf16> to vector<128x36xbf16>
    %c0_52 = arith.constant 0 : index
    %c0_53 = arith.constant 0 : index
    %48 = vector.load %arg3[%c0_52, %c0_53] : memref<36x128xbf16, #tpu.memory_space<vmem>>, vector<36x128xbf16>
    %cst = arith.constant dense<0.000000e+00> : vector<128x128xf32>
    %49 = tpu.matmul %47, %48, %cst {dimension_numbers = #tpu.dot_dimension_numbers<[1], [0], [0], [1], [0, 0, 1, 1], [], []>} : vector<128x36xbf16>, vector<36x128xbf16>, vector<128x128xf32> -> vector<128x128xf32>
    %cst_54 = arith.constant 0.000000e+00 : f32
    %50 = vector.broadcast %cst_54 : f32 to vector<128x128xf32>
    %51 = arith.maximumf %49, %50 : vector<128x128xf32>
    %cst_55 = arith.constant dense<0.000000e+00> : vector<128xf32>
    %52 = vector.multi_reduction <add>, %51, %cst_55 [0] : vector<128x128xf32> to vector<128xf32>
    %53 = vector.shape_cast %52 : vector<128xf32> to vector<1x128xf32>
    %54 = arith.mulf %51, %51 : vector<128x128xf32>
    %cst_56 = arith.constant dense<0.000000e+00> : vector<128xf32>
    %55 = vector.multi_reduction <add>, %54, %cst_56 [0] : vector<128x128xf32> to vector<128xf32>
    %56 = vector.shape_cast %55 : vector<128xf32> to vector<1x128xf32>
    %57 = tpu.iota {dimensions = array<i32: 0>} : vector<8x128xi32>
    %c0_i32_57 = arith.constant 0 : i32
    %58 = vector.broadcast %c0_i32_57 : i32 to vector<8x128xi32>
    %59 = arith.cmpi eq, %57, %58 : vector<8x128xi32>
    %c1_i32_58 = arith.constant 1 : i32
    %60 = vector.broadcast %c1_i32_58 : i32 to vector<8x128xi32>
    %61 = arith.cmpi eq, %57, %60 : vector<8x128xi32>
    %cst_59 = arith.constant 0.000000e+00 : f32
    %62 = vector.shape_cast %56 : vector<1x128xf32> to vector<1x128xf32>
    %63 = vector.broadcast %62 : vector<1x128xf32> to vector<8x128xf32>
    %64 = vector.broadcast %cst_59 : f32 to vector<8x128xf32>
    %65 = arith.select %61, %63, %64 : vector<8x128xi1>, vector<8x128xf32>
    %66 = vector.shape_cast %53 : vector<1x128xf32> to vector<1x128xf32>
    %67 = vector.broadcast %66 : vector<1x128xf32> to vector<8x128xf32>
    %68 = arith.select %59, %67, %65 : vector<8x128xi1>, vector<8x128xf32>
    %c0_60 = arith.constant 0 : index
    %c0_61 = arith.constant 0 : index
    %c0_62 = arith.constant 0 : index
    %69 = vector.load %arg5[%c0_60, %c0_61, %c0_62] : memref<1x8x128xf32, #tpu.memory_space<vmem>>, vector<1x8x128xf32>
    %70 = vector.shape_cast %69 : vector<1x8x128xf32> to vector<8x128xf32>
    %71 = vector.shape_cast %68 : vector<8x128xf32> to vector<1x8x128xf32>
    tpu.vector_store %arg5[%c0_60, %c0_61, %c0_62], %71 {strides = array<i32>} : memref<1x8x128xf32, #tpu.memory_space<vmem>>, vector<1x8x128xf32>,
    %72 = tpu.transpose %51, [1, 0] : vector<128x128xf32> -> vector<128x128xf32>
    %73 = vector.extract_strided_slice %72 {offsets = [0, 0], sizes = [8, 128], strides = [1, 1]} : vector<128x128xf32> to vector<8x128xf32>
    %74 = arith.truncf %73 : vector<8x128xf32> to vector<8x128xbf16>
    %c0_63 = arith.constant 0 : index
    %c0_64 = arith.constant 0 : index
    %c0_65 = arith.constant 0 : index
    %75 = vector.load %arg4[%c0_63, %c0_64, %c0_65] : memref<1x8x128xbf16, #tpu.memory_space<vmem>>, vector<1x8x128xbf16>
    %76 = vector.shape_cast %75 : vector<1x8x128xbf16> to vector<8x128xbf16>
    %77 = vector.shape_cast %74 : vector<8x128xbf16> to vector<1x8x128xbf16>
    tpu.vector_store %arg4[%c0_63, %c0_64, %c0_65], %77 {strides = array<i32>} : memref<1x8x128xbf16, #tpu.memory_space<vmem>>, vector<1x8x128xbf16>,
    return
  }
  func.func @transform_0(%arg0: i32, %arg1: i32) -> (i32, i32, i32, i32) {
    %c0_i32 = arith.constant 0 : i32
    %c0_i32_0 = arith.constant 0 : i32
    %c0_i32_1 = arith.constant 0 : i32
    %c0_i32_2 = arith.constant 0 : i32
    return %arg0, %c0_i32, %c0_i32_0, %c0_i32_1 : i32, i32, i32, i32
  }
  func.func @transform_1(%arg0: i32, %arg1: i32) -> (i32, i32) {
    %c0_i32 = arith.constant 0 : i32
    %c0_i32_0 = arith.constant 0 : i32
    %c0_i32_1 = arith.constant 0 : i32
    return %c0_i32, %c0_i32_0 : i32, i32
  }
  func.func @transform_2(%arg0: i32, %arg1: i32) -> (i32, i32, i32) {
    %c0_i32 = arith.constant 0 : i32
    %c0_i32_0 = arith.constant 0 : i32
    return %arg0, %c0_i32, %arg1 : i32, i32, i32
  }
  func.func @transform_3(%arg0: i32, %arg1: i32) -> (i32, i32, i32) {
    %c0_i32 = arith.constant 0 : i32
    %c0_i32_0 = arith.constant 0 : i32
    return %arg0, %arg1, %c0_i32 : i32, i32, i32
  }
}

</mosaic_0001>

<llo_original>
// kernel: tpu_custom_call.1
$region0: #{tpu_custom_call.1}
  #allocation0 [shape = 'u32[]', space=smem, size = 0x4, offset = 0x4, fixed_abs, tag = 'smem constant byte address 0x4 - core index']
  #allocation1 [shape = 'u32[144,128]{1,0:T(1,128)}', space=vmem, size = 0x12000, scoped, tag = 'internal scratch']
  #allocation2 [shape = 'bf16[8,16,36]{2,1,0:T(8,128)(2,1)}', space=vmem, size = 0x8000, scoped, tag = 'scratch operand']
  %s0 = inlined_call_operand.vmem [shape: bf16[2,18,18,4], index: 0, kind: input, shape index: {}]
  %s1 = inlined_call_operand.vmem [shape: bf16[36,128], index: 1, kind: input, shape index: {}]
  %s2 = inlined_call_operand.hbm [shape: bf16[2,8,256], index: 2, kind: output, shape index: {0}]
  %s3 = inlined_call_operand.hbm [shape: f32[2,16,128], index: 3, kind: output, shape index: {1}]
  %4 = xla_tuple %s2, %s3
  %s5 = sld [smem:[#allocation0]]
  $region49: #{tpu_custom_call.1} parent=0
    _
  %s7 = ssub.s32 1, %s5
  %s8 = scalar_select 0, %s7, %s5
  $region1: #{tpu_custom_call.1} parent=0
    #allocation3 [shape = 'u8[4096]{0}', space=vmem, size = 0x1000, scoped, tag = 'output window, operand 0']
    #allocation4 [shape = 's32[2]{0}', space=sflag, size = 0x8, scoped, tag = 'scoped memory for tpu_custom_call.1']
    #allocation5 [shape = 'u8[8192]{0}', space=vmem, size = 0x2000, scoped, tag = 'output window, operand 1']
    #allocation6 [shape = 's32[2]{0}', space=sflag, size = 0x8, scoped, tag = 'scoped memory for tpu_custom_call.1']
    %9 = vsyncpa [#allocation4], 0
    %s10 = scalar_lea.sflag [#allocation4], 1
    %11 = vsyncpa %s10, 0
    %12 = vsyncpa [#allocation6], 0
    %s13 = scalar_lea.sflag [#allocation6], 1
    %14 = vsyncpa %s13, 0
    loop: start=0, step=1, limit=6
    $region2: #{tpu_custom_call.1} parent=1 // loop_pre_header
      _
    $region3: #{tpu_custom_call.1} parent=1 // loop_header
      %s16 = sphi 0, %s20
      %p17 = scmp.ge.s32.totalorder %s16, 6
      %s23 = sphi 0, %s35
      %s24 = sphi 0, %s31
      %s25 = sphi 0, %s23
      %s26 = sphi 0, %s24
      %s27 = sphi 0, %s25
      %s28 = sphi 0, %s26
      %s38 = sphi 0, %s40
      %s41 = sphi 0, %s38
      %s42 = sphi 0, %s41
      %s58 = sphi 0, %s42
      %s62 = sphi 0, %s62
      %s64 = sphi 0, %s62
      %s65 = sphi 0, %s64
      %s79 = sphi 0, %s65
      %s87 = sphi 0, %s89
      %s90 = sphi 0, %s87
      %s91 = sphi 0, %s90
      %s107 = sphi 0, %s91
      %s115 = sphi 0, %s117
      %s118 = sphi 0, %s115
      %s119 = sphi 0, %s118
      %s135 = sphi 0, %s119
    $region4: #{tpu_custom_call.1} parent=1 // loop_header_branch
      %19 = sbr.rel (%p17) target = $region8
    $region5: #{tpu_custom_call.1} parent=1 // loop_body
      %s21 = ssub.s32 %s16, 1
      %s22 = ssub.s32 %s16, 2
      %s29 = sadd.s32 1, %s24
      %p30 = scmp.ge.s32.totalorder %s29, 2
      %s31 = scalar_select %p30, 0, %s29
      %s32 = sadd.s32 1, %s23
      %s33 = scalar_select %p30, %s32, %s23
      %p34 = scmp.ge.s32.totalorder %s33, 2
      %s35 = scalar_select %p34, 0, %s33
      %s36 = ssub.s32 %s23, %s35
      %p37 = scmp.eq.s32.totalorder %s36, 0
      %s39 = sadd.s32 %s38, 1
      %s40 = scalar_select %p37, %s38, %s39
      %p43 = pneg %p37
      %p44 = scmp.eq.s32.totalorder %s16, 3
      %p45 = por %p43, %p44
      %p46 = scmp.ne.s32.totalorder %s38, %s41
      %p47 = scmp.eq.s32.totalorder %s16, 0
      %p48 = por %p46, %p47
      %p49 = scmp.ne.s32.totalorder %s38, %s41
      %p50 = scmp.eq.s32.totalorder %s21, 3
      %p51 = por %p49, %p50
      %p52 = scmp.ne.s32.totalorder %s41, %s42
      %p53 = scmp.eq.s32.totalorder %s21, 0
      %p54 = por %p52, %p53
      %p55 = scmp.ne.s32.totalorder %s41, %s42
      %p56 = scmp.eq.s32.totalorder %s22, 3
      %p57 = por %p55, %p56
      %p59 = scmp.ne.s32.totalorder %s42, %s58
      %p60 = scmp.eq.s32.totalorder %s22, 0
      %p61 = por %p59, %p60
      %s63 = sadd.s32 %s62, 1
      %p66 = scmp.eq.s32.totalorder %s16, 3
      %p67 = scmp.ne.s32.totalorder %s62, %s64
      %p68 = scmp.eq.s32.totalorder %s16, 0
      %p69 = por %p67, %p68
      %p70 = scmp.ne.s32.totalorder %s62, %s64
      %p71 = scmp.eq.s32.totalorder %s21, 3
      %p72 = por %p70, %p71
      %p73 = scmp.ne.s32.totalorder %s64, %s65
      %p74 = scmp.eq.s32.totalorder %s21, 0
      %p75 = por %p73, %p74
      %p76 = scmp.ne.s32.totalorder %s64, %s65
      %p77 = scmp.eq.s32.totalorder %s22, 3
      %p78 = por %p76, %p77
      %p80 = scmp.ne.s32.totalorder %s65, %s79
      %p81 = scmp.eq.s32.totalorder %s22, 0
      %p82 = por %p80, %p81
      %s83 = ssub.s32 %s23, %s35
      %s84 = ssub.s32 %s24, %s31
      %s85 = sor.u32 %s83, %s84
      %p86 = scmp.eq.s32.totalorder %s85, 0
      %s88 = sadd.s32 %s87, 1
      %s89 = scalar_select %p86, %s87, %s88
      %p92 = pneg %p86
      %p93 = scmp.eq.s32.totalorder %s16, 3
      %p94 = por %p92, %p93
      %p95 = scmp.ne.s32.totalorder %s87, %s90
      %p96 = scmp.eq.s32.totalorder %s16, 0
      %p97 = por %p95, %p96
      %p98 = scmp.ne.s32.totalorder %s87, %s90
      %p99 = scmp.eq.s32.totalorder %s21, 3
      %p100 = por %p98, %p99
      %p101 = scmp.ne.s32.totalorder %s90, %s91
      %p102 = scmp.eq.s32.totalorder %s21, 0
      %p103 = por %p101, %p102
      %p104 = scmp.ne.s32.totalorder %s90, %s91
      %p105 = scmp.eq.s32.totalorder %s22, 3
      %p106 = por %p104, %p105
      %p108 = scmp.ne.s32.totalorder %s91, %s107
      %p109 = scmp.eq.s32.totalorder %s22, 0
      %p110 = por %p108, %p109
      %s111 = ssub.s32 %s23, %s35
      %s112 = ssub.s32 %s24, %s31
      %s113 = sor.u32 %s111, %s112
      %p114 = scmp.eq.s32.totalorder %s113, 0
      %s116 = sadd.s32 %s115, 1
      %s117 = scalar_select %p114, %s115, %s116
      %p120 = pneg %p114
      %p121 = scmp.eq.s32.totalorder %s16, 3
      %p122 = por %p120, %p121
      %p123 = scmp.ne.s32.totalorder %s115, %s118
      %p124 = scmp.eq.s32.totalorder %s16, 0
      %p125 = por %p123, %p124
      %p126 = scmp.ne.s32.totalorder %s115, %s118
      %p127 = scmp.eq.s32.totalorder %s21, 3
      %p128 = por %p126, %p127
      %p129 = scmp.ne.s32.totalorder %s118, %s119
      %p130 = scmp.eq.s32.totalorder %s21, 0
      %p131 = por %p129, %p130
      %p132 = scmp.ne.s32.totalorder %s118, %s119
      %p133 = scmp.eq.s32.totalorder %s22, 3
      %p134 = por %p132, %p133
      %p136 = scmp.ne.s32.totalorder %s119, %s135
      %p137 = scmp.eq.s32.totalorder %s22, 0
      %p138 = por %p136, %p137
      %p139 = scmp.le.s32.totalorder 1, %s16
      %p140 = scmp.lt.s32.totalorder %s16, 5
      %p141 = pnand %p139, %p140
      %p142 = pneg %p141
      // Predicated region
      $region9: #{tpu_custom_call.1} parent=5 // pred_check
        _
      $region10: #{tpu_custom_call.1} parent=5 // pred_check_branch
        %144 = sbr.rel (%p141) target = $region12
      $region11: #{tpu_custom_call.1} parent=5 // pred_region
        %s145 = ssub.s32 %s16, 1
        // Predicated region
        $region13: #{tpu_custom_call.1} parent=11 // pred_check
          %p146 = pneg %p75
        $region14: #{tpu_custom_call.1} parent=11 // pred_check_branch
          %148 = sbr.rel (%p146) target = $region16
        $region15: #{tpu_custom_call.1} parent=11 // pred_region
          _
        $region16: #{tpu_custom_call.1} parent=11 // pred_fallthru
          _
      $region12: #{tpu_custom_call.1} parent=5 // pred_fallthru
        _
      %p149 = scmp.lt.s32.totalorder %s16, 4
      // Predicated region
      $region17: #{tpu_custom_call.1} parent=5 // pred_check
        %p150 = pneg %p149
      $region18: #{tpu_custom_call.1} parent=5 // pred_check_branch
        %152 = sbr.rel (%p150) target = $region20
      $region19: #{tpu_custom_call.1} parent=5 // pred_region
        // Predicated region
        $region21: #{tpu_custom_call.1} parent=19 // pred_check
          %p153 = pneg %p48
        $region22: #{tpu_custom_call.1} parent=19 // pred_check_branch
          %155 = sbr.rel (%p153) target = $region24
        $region23: #{tpu_custom_call.1} parent=19 // pred_region
          %p156 = scmp.lt.s32.totalorder %s23, 1
          %s157 = scalar_select %p156, %s23, 1
          %s158 = smul.addr %s157, 54
          %s159 = smul.addr %s158, 4
          %s160 = scalar_lea.vmem %s0, %s159
        $region24: #{tpu_custom_call.1} parent=19 // pred_fallthru
          _
      $region20: #{tpu_custom_call.1} parent=5 // pred_fallthru
        _
      %p161 = scmp.le.s32.totalorder 1, %s16
      %p162 = scmp.lt.s32.totalorder %s16, 5
      %p163 = pnand %p161, %p162
      %p164 = pneg %p163
      // Predicated region
      $region25: #{tpu_custom_call.1} parent=5 // pred_check
        _
      $region26: #{tpu_custom_call.1} parent=5 // pred_check_branch
        %166 = sbr.rel (%p163) target = $region28
      $region27: #{tpu_custom_call.1} parent=5 // pred_region
        %s167 = ssub.s32 %s16, 1
        %p168 = scmp.lt.s32.totalorder %s25, 1
        %s169 = scalar_select %p168, %s25, 1
        %s170 = smul.addr %s169, 54
        %s171 = smul.addr %s170, 4
        %s172 = scalar_lea.vmem %s0, %s171
        %p173 = pneg %p54
        %p174 = pneg %p51
        %p175 = pneg %p75
        %p176 = pneg %p72
        %p177 = pneg %p103
        %p178 = pneg %p100
        %s179 = sand.u32 %s90, 1
        %s180 = scalar_lea.sflag [#allocation4], %s179
        %s181 = sand.u32 %s90, 1
        %s182 = smul.addr %s181, 4
        %s183 = scalar_lea.vmem [#allocation3], %s182
        %p184 = pneg %p131
        %p185 = pneg %p128
        %s186 = sand.u32 %s118, 1
        %s187 = scalar_lea.sflag [#allocation6], %s186
        %s188 = sand.u32 %s118, 1
        %s189 = smul.addr %s188, 8
        %s190 = scalar_lea.vmem [#allocation5], %s189
        %p191 = scmp.lt.s32.totalorder %s25, 1
        %s192 = scalar_select %p191, %s25, 1
        %s193 = smul.addr %s192, 54
        %s194 = smul.addr %s193, 4
        %s195 = scalar_lea.vmem %s0, %s194
        %s197 = smul.u32 %s26, 8
        %s198 = smul.u32 %s197, 3
        %s199 = smul.addr %s198, 4
        %s200 = scalar_lea.vmem %s195, %s199
        %v201 = vld [vmem:[%s200] sm:$0xf]
        %v202 = vld [vmem:[%s200 + $0x4] sm:$0xf]
        %v203 = vld [vmem:[%s200 + $0xc] sm:$0xf]
        %v204 = vld [vmem:[%s200 + $0x10] sm:$0xf]
        %v205 = vld [vmem:[%s200 + $0x18] sm:$0xf]
        %v206 = vld [vmem:[%s200 + $0x1c] sm:$0xf]
        %v207 = vld [vmem:[%s200 + $0x24] sm:$0xf]
        %v208 = vld [vmem:[%s200 + $0x28] sm:$0xf]
        %v209 = vld [vmem:[%s200 + $0x30] sm:$0xf]
        %v210 = vld [vmem:[%s200 + $0x34] sm:$0xf]
        %v211 = vld [vmem:[%s200 + $0x3c] sm:$0xf]
        %v212 = vld [vmem:[%s200 + $0x40] sm:$0xf]
        %v213 = vld [vmem:[%s200 + $0x48] sm:$0xf]
        %v214 = vld [vmem:[%s200 + $0x4c] sm:$0xf]
        %v215 = vld [vmem:[%s200 + $0x54] sm:$0xf]
        %v216 = vld [vmem:[%s200 + $0x58] sm:$0xf]
        %vm217 = vcmask 27648
        %218 = vst.msk [vmem:[#allocation2] sm:$0xf] %vm217, %v201
        %219 = vst.msk [vmem:[#allocation2 + $0x4] sm:$0xf] %vm217, %v202
        %220 = vst.msk [vmem:[#allocation2 + $0x8] sm:$0xf] %vm217, %v203
        %221 = vst.msk [vmem:[#allocation2 + $0xc] sm:$0xf] %vm217, %v204
        %222 = vst.msk [vmem:[#allocation2 + $0x10] sm:$0xf] %vm217, %v205
        %223 = vst.msk [vmem:[#allocation2 + $0x14] sm:$0xf] %vm217, %v206
        %224 = vst.msk [vmem:[#allocation2 + $0x18] sm:$0xf] %vm217, %v207
        %225 = vst.msk [vmem:[#allocation2 + $0x1c] sm:$0xf] %vm217, %v208
        %226 = vst.msk [vmem:[#allocation2 + $0x20] sm:$0xf] %vm217, %v209
        %227 = vst.msk [vmem:[#allocation2 + $0x24] sm:$0xf] %vm217, %v210
        %228 = vst.msk [vmem:[#allocation2 + $0x28] sm:$0xf] %vm217, %v211
        %229 = vst.msk [vmem:[#allocation2 + $0x2c] sm:$0xf] %vm217, %v212
        %230 = vst.msk [vmem:[#allocation2 + $0x30] sm:$0xf] %vm217, %v213
        %231 = vst.msk [vmem:[#allocation2 + $0x34] sm:$0xf] %vm217, %v214
        %232 = vst.msk [vmem:[#allocation2 + $0x38] sm:$0xf] %vm217, %v215
        %233 = vst.msk [vmem:[#allocation2 + $0x3c] sm:$0xf] %vm217, %v216
        %v234 = vld [vmem:[%s200] sm:$0xf]
        %v235 = vld [vmem:[%s200 + $0x4] sm:$0xf]
        %v236 = vld [vmem:[%s200 + $0x8] sm:$0x1]
        %v237 = vld [vmem:[%s200 + $0xc] sm:$0xf]
        %v238 = vld [vmem:[%s200 + $0x10] sm:$0xf]
        %v239 = vld [vmem:[%s200 + $0x14] sm:$0x1]
        %v240 = vld [vmem:[%s200 + $0x18] sm:$0xf]
        %v241 = vld [vmem:[%s200 + $0x1c] sm:$0xf]
        %v242 = vld [vmem:[%s200 + $0x20] sm:$0x1]
        %v243 = vld [vmem:[%s200 + $0x24] sm:$0xf]
        %v244 = vld [vmem:[%s200 + $0x28] sm:$0xf]
        %v245 = vld [vmem:[%s200 + $0x2c] sm:$0x1]
        %v246 = vld [vmem:[%s200 + $0x30] sm:$0xf]
        %v247 = vld [vmem:[%s200 + $0x34] sm:$0xf]
        %v248 = vld [vmem:[%s200 + $0x38] sm:$0x1]
        %v249 = vld [vmem:[%s200 + $0x3c] sm:$0xf]
        %v250 = vld [vmem:[%s200 + $0x40] sm:$0xf]
        %v251 = vld [vmem:[%s200 + $0x44] sm:$0x1]
        %v252 = vld [vmem:[%s200 + $0x48] sm:$0xf]
        %v253 = vld [vmem:[%s200 + $0x4c] sm:$0xf]
        %v254 = vld [vmem:[%s200 + $0x50] sm:$0x1]
        %v255 = vld [vmem:[%s200 + $0x54] sm:$0xf]
        %v256 = vld [vmem:[%s200 + $0x58] sm:$0xf]
        %v257 = vld [vmem:[%s200 + $0x5c] sm:$0x1]
        %vm258 = vsmask.f32 3328
        %vm259 = vsmask.f32 7440
        %vm260 = vmor %vm258, %vm259
        %v262 = vshrl.u32 %v234, 16
        %v264 = vrot.slane %v262, 4
        %v265 = vshll.u32 %v234, 16
        %v267 = vrot.slane %v265, 5
        %v268 = vor.u32 %v264, %v267
        %v269 = vrot.slane %v268, 4
        %v271 = vshll.u32 %v235, 16
        %v273 = vrot.slane %v271, 5
        %v274 = vsel %vm260, %v269, %v273
        %v275 = vshrl.u32 %v235, 16
        %v277 = vrot.slane %v275, 4
        %v278 = vor.u32 %v277, %v273
        %v279 = vrot.slane %v278, 4
        %v281 = vshll.u32 %v236, 16
        %v283 = vrot.slane %v281, 5
        %v284 = vsel %vm260, %v279, %v283
        %v286 = vshrl.u32 %v237, 16
        %v288 = vrot.slane %v286, 4
        %v289 = vshll.u32 %v237, 16
        %v291 = vrot.slane %v289, 5
        %v292 = vor.u32 %v288, %v291
        %v293 = vrot.slane %v292, 4
        %v295 = vshll.u32 %v238, 16
        %v297 = vrot.slane %v295, 5
        %v298 = vsel %vm260, %v293, %v297
        %v299 = vshrl.u32 %v238, 16
        %v301 = vrot.slane %v299, 4
        %v302 = vor.u32 %v301, %v297
        %v303 = vrot.slane %v302, 4
        %v305 = vshll.u32 %v239, 16
        %v307 = vrot.slane %v305, 5
        %v308 = vsel %vm260, %v303, %v307
        %v310 = vshrl.u32 %v240, 16
        %v312 = vrot.slane %v310, 4
        %v313 = vshll.u32 %v240, 16
        %v315 = vrot.slane %v313, 5
        %v316 = vor.u32 %v312, %v315
        %v317 = vrot.slane %v316, 4
        %v319 = vshll.u32 %v241, 16
        %v321 = vrot.slane %v319, 5
        %v322 = vsel %vm260, %v317, %v321
        %v323 = vshrl.u32 %v241, 16
        %v325 = vrot.slane %v323, 4
        %v326 = vor.u32 %v325, %v321
        %v327 = vrot.slane %v326, 4
        %v329 = vshll.u32 %v242, 16
        %v331 = vrot.slane %v329, 5
        %v332 = vsel %vm260, %v327, %v331
        %v334 = vshrl.u32 %v243, 16
        %v336 = vrot.slane %v334, 4
        %v337 = vshll.u32 %v243, 16
        %v339 = vrot.slane %v337, 5
        %v340 = vor.u32 %v336, %v339
        %v341 = vrot.slane %v340, 4
        %v343 = vshll.u32 %v244, 16
        %v345 = vrot.slane %v343, 5
        %v346 = vsel %vm260, %v341, %v345
        %v347 = vshrl.u32 %v244, 16
        %v349 = vrot.slane %v347, 4
        %v350 = vor.u32 %v349, %v345
        %v351 = vrot.slane %v350, 4
        %v353 = vshll.u32 %v245, 16
        %v355 = vrot.slane %v353, 5
        %v356 = vsel %vm260, %v351, %v355
        %v358 = vshrl.u32 %v246, 16
        %v360 = vrot.slane %v358, 4
        %v361 = vshll.u32 %v246, 16
        %v363 = vrot.slane %v361, 5
        %v364 = vor.u32 %v360, %v363
        %v365 = vrot.slane %v364, 4
        %v367 = vshll.u32 %v247, 16
        %v369 = vrot.slane %v367, 5
        %v370 = vsel %vm260, %v365, %v369
        %v371 = vshrl.u32 %v247, 16
        %v373 = vrot.slane %v371, 4
        %v374 = vor.u32 %v373, %v369
        %v375 = vrot.slane %v374, 4
        %v377 = vshll.u32 %v248, 16
        %v379 = vrot.slane %v377, 5
        %v380 = vsel %vm260, %v375, %v379
        %v382 = vshrl.u32 %v249, 16
        %v384 = vrot.slane %v382, 4
        %v385 = vshll.u32 %v249, 16
        %v387 = vrot.slane %v385, 5
        %v388 = vor.u32 %v384, %v387
        %v389 = vrot.slane %v388, 4
        %v391 = vshll.u32 %v250, 16
        %v393 = vrot.slane %v391, 5
        %v394 = vsel %vm260, %v389, %v393
        %v395 = vshrl.u32 %v250, 16
        %v397 = vrot.slane %v395, 4
        %v398 = vor.u32 %v397, %v393
        %v399 = vrot.slane %v398, 4
        %v401 = vshll.u32 %v251, 16
        %v403 = vrot.slane %v401, 5
        %v404 = vsel %vm260, %v399, %v403
        %v406 = vshrl.u32 %v252, 16
        %v408 = vrot.slane %v406, 4
        %v409 = vshll.u32 %v252, 16
        %v411 = vrot.slane %v409, 5
        %v412 = vor.u32 %v408, %v411
        %v413 = vrot.slane %v412, 4
        %v415 = vshll.u32 %v253, 16
        %v417 = vrot.slane %v415, 5
        %v418 = vsel %vm260, %v413, %v417
        %v419 = vshrl.u32 %v253, 16
        %v421 = vrot.slane %v419, 4
        %v422 = vor.u32 %v421, %v417
        %v423 = vrot.slane %v422, 4
        %v425 = vshll.u32 %v254, 16
        %v427 = vrot.slane %v425, 5
        %v428 = vsel %vm260, %v423, %v427
        %v430 = vshrl.u32 %v255, 16
        %v432 = vrot.slane %v430, 4
        %v433 = vshll.u32 %v255, 16
        %v435 = vrot.slane %v433, 5
        %v436 = vor.u32 %v432, %v435
        %v437 = vrot.slane %v436, 4
        %v439 = vshll.u32 %v256, 16
        %v441 = vrot.slane %v439, 5
        %v442 = vsel %vm260, %v437, %v441
        %v443 = vshrl.u32 %v256, 16
        %v445 = vrot.slane %v443, 4
        %v446 = vor.u32 %v445, %v441
        %v447 = vrot.slane %v446, 4
        %v449 = vshll.u32 %v257, 16
        %v451 = vrot.slane %v449, 5
        %v452 = vsel %vm260, %v447, %v451
        %453 = vrot.lane.b32.xlu0 %v274, 4
        %v454 = vpop.permute.xlu0 %453
        %455 = vrot.lane.b32.xlu0 %v284, 4
        %v456 = vpop.permute.xlu0 %455
        %457 = vrot.lane.b32.xlu0 %v298, 4
        %v458 = vpop.permute.xlu0 %457
        %459 = vrot.lane.b32.xlu0 %v308, 4
        %v460 = vpop.permute.xlu0 %459
        %461 = vrot.lane.b32.xlu0 %v322, 4
        %v462 = vpop.permute.xlu0 %461
        %463 = vrot.lane.b32.xlu0 %v332, 4
        %v464 = vpop.permute.xlu0 %463
        %465 = vrot.lane.b32.xlu0 %v346, 4
        %v466 = vpop.permute.xlu0 %465
        %467 = vrot.lane.b32.xlu0 %v356, 4
        %v468 = vpop.permute.xlu0 %467
        %469 = vrot.lane.b32.xlu0 %v370, 4
        %v470 = vpop.permute.xlu0 %469
        %471 = vrot.lane.b32.xlu0 %v380, 4
        %v472 = vpop.permute.xlu0 %471
        %473 = vrot.lane.b32.xlu0 %v394, 4
        %v474 = vpop.permute.xlu0 %473
        %475 = vrot.lane.b32.xlu0 %v404, 4
        %v476 = vpop.permute.xlu0 %475
        %477 = vrot.lane.b32.xlu0 %v418, 4
        %v478 = vpop.permute.xlu0 %477
        %479 = vrot.lane.b32.xlu0 %v428, 4
        %v480 = vpop.permute.xlu0 %479
        %481 = vrot.lane.b32.xlu0 %v442, 4
        %v482 = vpop.permute.xlu0 %481
        %483 = vrot.lane.b32.xlu0 %v452, 4
        %v484 = vpop.permute.xlu0 %483
        %vm501 = vcmask 60448
        %502 = vst.msk [vmem:[#allocation2] sm:$0xf] %vm501, %v454
        %503 = vst.msk [vmem:[#allocation2 + $0x4] sm:$0xf] %vm501, %v456
        %504 = vst.msk [vmem:[#allocation2 + $0x8] sm:$0xf] %vm501, %v458
        %505 = vst.msk [vmem:[#allocation2 + $0xc] sm:$0xf] %vm501, %v460
        %506 = vst.msk [vmem:[#allocation2 + $0x10] sm:$0xf] %vm501, %v462
        %507 = vst.msk [vmem:[#allocation2 + $0x14] sm:$0xf] %vm501, %v464
        %508 = vst.msk [vmem:[#allocation2 + $0x18] sm:$0xf] %vm501, %v466
        %509 = vst.msk [vmem:[#allocation2 + $0x1c] sm:$0xf] %vm501, %v468
        %510 = vst.msk [vmem:[#allocation2 + $0x20] sm:$0xf] %vm501, %v470
        %511 = vst.msk [vmem:[#allocation2 + $0x24] sm:$0xf] %vm501, %v472
        %512 = vst.msk [vmem:[#allocation2 + $0x28] sm:$0xf] %vm501, %v474
        %513 = vst.msk [vmem:[#allocation2 + $0x2c] sm:$0xf] %vm501, %v476
        %514 = vst.msk [vmem:[#allocation2 + $0x30] sm:$0xf] %vm501, %v478
        %515 = vst.msk [vmem:[#allocation2 + $0x34] sm:$0xf] %vm501, %v480
        %516 = vst.msk [vmem:[#allocation2 + $0x38] sm:$0xf] %vm501, %v482
        %517 = vst.msk [vmem:[#allocation2 + $0x3c] sm:$0xf] %vm501, %v484
        %v518 = vld [vmem:[%s200] sm:$0xe]
        %v519 = vld [vmem:[%s200 + $0x4] sm:$0xf]
        %v520 = vld [vmem:[%s200 + $0x8] sm:$0x1]
        %v521 = vld [vmem:[%s200 + $0xc] sm:$0xe]
        %v522 = vld [vmem:[%s200 + $0x10] sm:$0xf]
        %v523 = vld [vmem:[%s200 + $0x14] sm:$0x1]
        %v524 = vld [vmem:[%s200 + $0x18] sm:$0xe]
        %v525 = vld [vmem:[%s200 + $0x1c] sm:$0xf]
        %v526 = vld [vmem:[%s200 + $0x20] sm:$0x1]
        %v527 = vld [vmem:[%s200 + $0x24] sm:$0xe]
        %v528 = vld [vmem:[%s200 + $0x28] sm:$0xf]
        %v529 = vld [vmem:[%s200 + $0x2c] sm:$0x1]
        %v530 = vld [vmem:[%s200 + $0x30] sm:$0xe]
        %v531 = vld [vmem:[%s200 + $0x34] sm:$0xf]
        %v532 = vld [vmem:[%s200 + $0x38] sm:$0x1]
        %v533 = vld [vmem:[%s200 + $0x3c] sm:$0xe]
        %v534 = vld [vmem:[%s200 + $0x40] sm:$0xf]
        %v535 = vld [vmem:[%s200 + $0x44] sm:$0x1]
        %v536 = vld [vmem:[%s200 + $0x48] sm:$0xe]
        %v537 = vld [vmem:[%s200 + $0x4c] sm:$0xf]
        %v538 = vld [vmem:[%s200 + $0x50] sm:$0x1]
        %v539 = vld [vmem:[%s200 + $0x54] sm:$0xe]
        %v540 = vld [vmem:[%s200 + $0x58] sm:$0xf]
        %v541 = vld [vmem:[%s200 + $0x5c] sm:$0x1]
        %vm566 = vcmask 1042432
        %vm567 = vcmask 1046532
        %vm568 = vmor %vm566, %vm567
        %v569 = vrot.slane %v518, 5
        %v570 = vrot.slane %v569, 4
        %v571 = vrot.slane %v519, 5
        %v572 = vsel %vm568, %v570, %v571
        %v573 = vrot.slane %v571, 4
        %v574 = vrot.slane %v520, 5
        %v575 = vsel %vm568, %v573, %v574
        %v576 = vrot.slane %v521, 5
        %v577 = vrot.slane %v576, 4
        %v578 = vrot.slane %v522, 5
        %v579 = vsel %vm568, %v577, %v578
        %v580 = vrot.slane %v578, 4
        %v581 = vrot.slane %v523, 5
        %v582 = vsel %vm568, %v580, %v581
        %v583 = vrot.slane %v524, 5
        %v584 = vrot.slane %v583, 4
        %v585 = vrot.slane %v525, 5
        %v586 = vsel %vm568, %v584, %v585
        %v587 = vrot.slane %v585, 4
        %v588 = vrot.slane %v526, 5
        %v589 = vsel %vm568, %v587, %v588
        %v590 = vrot.slane %v527, 5
        %v591 = vrot.slane %v590, 4
        %v592 = vrot.slane %v528, 5
        %v593 = vsel %vm568, %v591, %v592
        %v594 = vrot.slane %v592, 4
        %v595 = vrot.slane %v529, 5
        %v596 = vsel %vm568, %v594, %v595
        %v597 = vrot.slane %v530, 5
        %v598 = vrot.slane %v597, 4
        %v599 = vrot.slane %v531, 5
        %v600 = vsel %vm568, %v598, %v599
        %v601 = vrot.slane %v599, 4
        %v602 = vrot.slane %v532, 5
        %v603 = vsel %vm568, %v601, %v602
        %v604 = vrot.slane %v533, 5
        %v605 = vrot.slane %v604, 4
        %v606 = vrot.slane %v534, 5
        %v607 = vsel %vm568, %v605, %v606
        %v608 = vrot.slane %v606, 4
        %v609 = vrot.slane %v535, 5
        %v610 = vsel %vm568, %v608, %v609
        %v611 = vrot.slane %v536, 5
        %v612 = vrot.slane %v611, 4
        %v613 = vrot.slane %v537, 5
        %v614 = vsel %vm568, %v612, %v613
        %v615 = vrot.slane %v613, 4
        %v616 = vrot.slane %v538, 5
        %v617 = vsel %vm568, %v615, %v616
        %v618 = vrot.slane %v539, 5
        %v619 = vrot.slane %v618, 4
        %v620 = vrot.slane %v540, 5
        %v621 = vsel %vm568, %v619, %v620
        %v622 = vrot.slane %v620, 4
        %v623 = vrot.slane %v541, 5
        %v624 = vsel %vm568, %v622, %v623
        %625 = vrot.lane.b32.xlu0 %v572, 8
        %v626 = vpop.permute.xlu0 %625
        %627 = vrot.lane.b32.xlu0 %v575, 8
        %v628 = vpop.permute.xlu0 %627
        %629 = vrot.lane.b32.xlu0 %v579, 8
        %v630 = vpop.permute.xlu0 %629
        %631 = vrot.lane.b32.xlu0 %v582, 8
        %v632 = vpop.permute.xlu0 %631
        %633 = vrot.lane.b32.xlu0 %v586, 8
        %v634 = vpop.permute.xlu0 %633
        %635 = vrot.lane.b32.xlu0 %v589, 8
        %v636 = vpop.permute.xlu0 %635
        %637 = vrot.lane.b32.xlu0 %v593, 8
        %v638 = vpop.permute.xlu0 %637
        %639 = vrot.lane.b32.xlu0 %v596, 8
        %v640 = vpop.permute.xlu0 %639
        %641 = vrot.lane.b32.xlu0 %v600, 8
        %v642 = vpop.permute.xlu0 %641
        %643 = vrot.lane.b32.xlu0 %v603, 8
        %v644 = vpop.permute.xlu0 %643
        %645 = vrot.lane.b32.xlu0 %v607, 8
        %v646 = vpop.permute.xlu0 %645
        %647 = vrot.lane.b32.xlu0 %v610, 8
        %v648 = vpop.permute.xlu0 %647
        %649 = vrot.lane.b32.xlu0 %v614, 8
        %v650 = vpop.permute.xlu0 %649
        %651 = vrot.lane.b32.xlu0 %v617, 8
        %v652 = vpop.permute.xlu0 %651
        %653 = vrot.lane.b32.xlu0 %v621, 8
        %v654 = vpop.permute.xlu0 %653
        %655 = vrot.lane.b32.xlu0 %v624, 8
        %v656 = vpop.permute.xlu0 %655
        %vm673 = vcmask 93248
        %674 = vst.msk [vmem:[#allocation2] sm:$0xf] %vm673, %v626
        %675 = vst.msk [vmem:[#allocation2 + $0x4] sm:$0xf] %vm673, %v628
        %676 = vst.msk [vmem:[#allocation2 + $0x8] sm:$0xf] %vm673, %v630
        %677 = vst.msk [vmem:[#allocation2 + $0xc] sm:$0xf] %vm673, %v632
        %678 = vst.msk [vmem:[#allocation2 + $0x10] sm:$0xf] %vm673, %v634
        %679 = vst.msk [vmem:[#allocation2 + $0x14] sm:$0xf] %vm673, %v636
        %680 = vst.msk [vmem:[#allocation2 + $0x18] sm:$0xf] %vm673, %v638
        %681 = vst.msk [vmem:[#allocation2 + $0x1c] sm:$0xf] %vm673, %v640
        %682 = vst.msk [vmem:[#allocation2 + $0x20] sm:$0xf] %vm673, %v642
        %683 = vst.msk [vmem:[#allocation2 + $0x24] sm:$0xf] %vm673, %v644
        %684 = vst.msk [vmem:[#allocation2 + $0x28] sm:$0xf] %vm673, %v646
        %685 = vst.msk [vmem:[#allocation2 + $0x2c] sm:$0xf] %vm673, %v648
        %686 = vst.msk [vmem:[#allocation2 + $0x30] sm:$0xf] %vm673, %v650
        %687 = vst.msk [vmem:[#allocation2 + $0x34] sm:$0xf] %vm673, %v652
        %688 = vst.msk [vmem:[#allocation2 + $0x38] sm:$0xf] %vm673, %v654
        %689 = vst.msk [vmem:[#allocation2 + $0x3c] sm:$0xf] %vm673, %v656
        %s690 = sadd.s32 %s197, 1
        %s691 = smul.u32 %s690, 3
        %s692 = smul.addr %s691, 4
        %s693 = scalar_lea.vmem %s195, %s692
        %v694 = vld [vmem:[%s693] sm:$0xf]
        %v695 = vld [vmem:[%s693 + $0x4] sm:$0xf]
        %v696 = vld [vmem:[%s693 + $0xc] sm:$0xf]
        %v697 = vld [vmem:[%s693 + $0x10] sm:$0xf]
        %v698 = vld [vmem:[%s693 + $0x18] sm:$0xf]
        %v699 = vld [vmem:[%s693 + $0x1c] sm:$0xf]
        %v700 = vld [vmem:[%s693 + $0x24] sm:$0xf]
        %v701 = vld [vmem:[%s693 + $0x28] sm:$0xf]
        %v702 = vld [vmem:[%s693 + $0x30] sm:$0xf]
        %v703 = vld [vmem:[%s693 + $0x34] sm:$0xf]
        %v704 = vld [vmem:[%s693 + $0x3c] sm:$0xf]
        %v705 = vld [vmem:[%s693 + $0x40] sm:$0xf]
        %v706 = vld [vmem:[%s693 + $0x48] sm:$0xf]
        %v707 = vld [vmem:[%s693 + $0x4c] sm:$0xf]
        %v708 = vld [vmem:[%s693 + $0x54] sm:$0xf]
        %v709 = vld [vmem:[%s693 + $0x58] sm:$0xf]
        %726 = vrot.lane.b32.xlu0 %v694, 12
        %v727 = vpop.permute.xlu0 %726
        %728 = vrot.lane.b32.xlu0 %v695, 12
        %v729 = vpop.permute.xlu0 %728
        %730 = vrot.lane.b32.xlu0 %v696, 12
        %v731 = vpop.permute.xlu0 %730
        %732 = vrot.lane.b32.xlu0 %v697, 12
        %v733 = vpop.permute.xlu0 %732
        %734 = vrot.lane.b32.xlu0 %v698, 12
        %v735 = vpop.permute.xlu0 %734
        %736 = vrot.lane.b32.xlu0 %v699, 12
        %v737 = vpop.permute.xlu0 %736
        %738 = vrot.lane.b32.xlu0 %v700, 12
        %v739 = vpop.permute.xlu0 %738
        %740 = vrot.lane.b32.xlu0 %v701, 12
        %v741 = vpop.permute.xlu0 %740
        %742 = vrot.lane.b32.xlu0 %v702, 12
        %v743 = vpop.permute.xlu0 %742
        %744 = vrot.lane.b32.xlu0 %v703, 12
        %v745 = vpop.permute.xlu0 %744
        %746 = vrot.lane.b32.xlu0 %v704, 12
        %v747 = vpop.permute.xlu0 %746
        %748 = vrot.lane.b32.xlu0 %v705, 12
        %v749 = vpop.permute.xlu0 %748
        %750 = vrot.lane.b32.xlu0 %v706, 12
        %v751 = vpop.permute.xlu0 %750
        %752 = vrot.lane.b32.xlu0 %v707, 12
        %v753 = vpop.permute.xlu0 %752
        %754 = vrot.lane.b32.xlu0 %v708, 12
        %v755 = vpop.permute.xlu0 %754
        %756 = vrot.lane.b32.xlu0 %v709, 12
        %v757 = vpop.permute.xlu0 %756
        %vm774 = vcmask 126048
        %775 = vst.msk [vmem:[#allocation2] sm:$0xf] %vm774, %v727
        %776 = vst.msk [vmem:[#allocation2 + $0x4] sm:$0xf] %vm774, %v729
        %777 = vst.msk [vmem:[#allocation2 + $0x8] sm:$0xf] %vm774, %v731
        %778 = vst.msk [vmem:[#allocation2 + $0xc] sm:$0xf] %vm774, %v733
        %779 = vst.msk [vmem:[#allocation2 + $0x10] sm:$0xf] %vm774, %v735
        %780 = vst.msk [vmem:[#allocation2 + $0x14] sm:$0xf] %vm774, %v737
        %781 = vst.msk [vmem:[#allocation2 + $0x18] sm:$0xf] %vm774, %v739
        %782 = vst.msk [vmem:[#allocation2 + $0x1c] sm:$0xf] %vm774, %v741
        %783 = vst.msk [vmem:[#allocation2 + $0x20] sm:$0xf] %vm774, %v743
        %784 = vst.msk [vmem:[#allocation2 + $0x24] sm:$0xf] %vm774, %v745
        %785 = vst.msk [vmem:[#allocation2 + $0x28] sm:$0xf] %vm774, %v747
        %786 = vst.msk [vmem:[#allocation2 + $0x2c] sm:$0xf] %vm774, %v749
        %787 = vst.msk [vmem:[#allocation2 + $0x30] sm:$0xf] %vm774, %v751
        %788 = vst.msk [vmem:[#allocation2 + $0x34] sm:$0xf] %vm774, %v753
        %789 = vst.msk [vmem:[#allocation2 + $0x38] sm:$0xf] %vm774, %v755
        %790 = vst.msk [vmem:[#allocation2 + $0x3c] sm:$0xf] %vm774, %v757
        %v791 = vld [vmem:[%s693] sm:$0xf]
        %v792 = vld [vmem:[%s693 + $0x4] sm:$0xf]
        %v793 = vld [vmem:[%s693 + $0x8] sm:$0x1]
        %v794 = vld [vmem:[%s693 + $0xc] sm:$0xf]
        %v795 = vld [vmem:[%s693 + $0x10] sm:$0xf]
        %v796 = vld [vmem:[%s693 + $0x14] sm:$0x1]
        %v797 = vld [vmem:[%s693 + $0x18] sm:$0xf]
        %v798 = vld [vmem:[%s693 + $0x1c] sm:$0xf]
        %v799 = vld [vmem:[%s693 + $0x20] sm:$0x1]
        %v800 = vld [vmem:[%s693 + $0x24] sm:$0xf]
        %v801 = vld [vmem:[%s693 + $0x28] sm:$0xf]
        %v802 = vld [vmem:[%s693 + $0x2c] sm:$0x1]
        %v803 = vld [vmem:[%s693 + $0x30] sm:$0xf]
        %v804 = vld [vmem:[%s693 + $0x34] sm:$0xf]
        %v805 = vld [vmem:[%s693 + $0x38] sm:$0x1]
        %v806 = vld [vmem:[%s693 + $0x3c] sm:$0xf]
        %v807 = vld [vmem:[%s693 + $0x40] sm:$0xf]
        %v808 = vld [vmem:[%s693 + $0x44] sm:$0x1]
        %v809 = vld [vmem:[%s693 + $0x48] sm:$0xf]
        %v810 = vld [vmem:[%s693 + $0x4c] sm:$0xf]
        %v811 = vld [vmem:[%s693 + $0x50] sm:$0x1]
        %v812 = vld [vmem:[%s693 + $0x54] sm:$0xf]
        %v813 = vld [vmem:[%s693 + $0x58] sm:$0xf]
        %v814 = vld [vmem:[%s693 + $0x5c] sm:$0x1]
        %v816 = vshrl.u32 %v791, 16
        %v818 = vrot.slane %v816, 4
        %v819 = vshll.u32 %v791, 16
        %v821 = vrot.slane %v819, 5
        %v822 = vor.u32 %v818, %v821
        %v823 = vrot.slane %v822, 4
        %v825 = vshll.u32 %v792, 16
        %v827 = vrot.slane %v825, 5
        %v828 = vsel %vm260, %v823, %v827
        %v829 = vshrl.u32 %v792, 16
        %v831 = vrot.slane %v829, 4
        %v832 = vor.u32 %v831, %v827
        %v833 = vrot.slane %v832, 4
        %v835 = vshll.u32 %v793, 16
        %v837 = vrot.slane %v835, 5
        %v838 = vsel %vm260, %v833, %v837
        %v840 = vshrl.u32 %v794, 16
        %v842 = vrot.slane %v840, 4
        %v843 = vshll.u32 %v794, 16
        %v845 = vrot.slane %v843, 5
        %v846 = vor.u32 %v842, %v845
        %v847 = vrot.slane %v846, 4
        %v849 = vshll.u32 %v795, 16
        %v851 = vrot.slane %v849, 5
        %v852 = vsel %vm260, %v847, %v851
        %v853 = vshrl.u32 %v795, 16
        %v855 = vrot.slane %v853, 4
        %v856 = vor.u32 %v855, %v851
        %v857 = vrot.slane %v856, 4
        %v859 = vshll.u32 %v796, 16
        %v861 = vrot.slane %v859, 5
        %v862 = vsel %vm260, %v857, %v861
        %v864 = vshrl.u32 %v797, 16
        %v866 = vrot.slane %v864, 4
        %v867 = vshll.u32 %v797, 16
        %v869 = vrot.slane %v867, 5
        %v870 = vor.u32 %v866, %v869
        %v871 = vrot.slane %v870, 4
        %v873 = vshll.u32 %v798, 16
        %v875 = vrot.slane %v873, 5
        %v876 = vsel %vm260, %v871, %v875
        %v877 = vshrl.u32 %v798, 16
        %v879 = vrot.slane %v877, 4
        %v880 = vor.u32 %v879, %v875
        %v881 = vrot.slane %v880, 4
        %v883 = vshll.u32 %v799, 16
        %v885 = vrot.slane %v883, 5
        %v886 = vsel %vm260, %v881, %v885
        %v888 = vshrl.u32 %v800, 16
        %v890 = vrot.slane %v888, 4
        %v891 = vshll.u32 %v800, 16
        %v893 = vrot.slane %v891, 5
        %v894 = vor.u32 %v890, %v893
        %v895 = vrot.slane %v894, 4
        %v897 = vshll.u32 %v801, 16
        %v899 = vrot.slane %v897, 5
        %v900 = vsel %vm260, %v895, %v899
        %v901 = vshrl.u32 %v801, 16
        %v903 = vrot.slane %v901, 4
        %v904 = vor.u32 %v903, %v899
        %v905 = vrot.slane %v904, 4
        %v907 = vshll.u32 %v802, 16
        %v909 = vrot.slane %v907, 5
        %v910 = vsel %vm260, %v905, %v909
        %v912 = vshrl.u32 %v803, 16
        %v914 = vrot.slane %v912, 4
        %v915 = vshll.u32 %v803, 16
        %v917 = vrot.slane %v915, 5
        %v918 = vor.u32 %v914, %v917
        %v919 = vrot.slane %v918, 4
        %v921 = vshll.u32 %v804, 16
        %v923 = vrot.slane %v921, 5
        %v924 = vsel %vm260, %v919, %v923
        %v925 = vshrl.u32 %v804, 16
        %v927 = vrot.slane %v925, 4
        %v928 = vor.u32 %v927, %v923
        %v929 = vrot.slane %v928, 4
        %v931 = vshll.u32 %v805, 16
        %v933 = vrot.slane %v931, 5
        %v934 = vsel %vm260, %v929, %v933
        %v936 = vshrl.u32 %v806, 16
        %v938 = vrot.slane %v936, 4
        %v939 = vshll.u32 %v806, 16
        %v941 = vrot.slane %v939, 5
        %v942 = vor.u32 %v938, %v941
        %v943 = vrot.slane %v942, 4
        %v945 = vshll.u32 %v807, 16
        %v947 = vrot.slane %v945, 5
        %v948 = vsel %vm260, %v943, %v947
        %v949 = vshrl.u32 %v807, 16
        %v951 = vrot.slane %v949, 4
        %v952 = vor.u32 %v951, %v947
        %v953 = vrot.slane %v952, 4
        %v955 = vshll.u32 %v808, 16
        %v957 = vrot.slane %v955, 5
        %v958 = vsel %vm260, %v953, %v957
        %v960 = vshrl.u32 %v809, 16
        %v962 = vrot.slane %v960, 4
        %v963 = vshll.u32 %v809, 16
        %v965 = vrot.slane %v963, 5
        %v966 = vor.u32 %v962, %v965
        %v967 = vrot.slane %v966, 4
        %v969 = vshll.u32 %v810, 16
        %v971 = vrot.slane %v969, 5
        %v972 = vsel %vm260, %v967, %v971
        %v973 = vshrl.u32 %v810, 16
        %v975 = vrot.slane %v973, 4
        %v976 = vor.u32 %v975, %v971
        %v977 = vrot.slane %v976, 4
        %v979 = vshll.u32 %v811, 16
        %v981 = vrot.slane %v979, 5
        %v982 = vsel %vm260, %v977, %v981
        %v984 = vshrl.u32 %v812, 16
        %v986 = vrot.slane %v984, 4
        %v987 = vshll.u32 %v812, 16
        %v989 = vrot.slane %v987, 5
        %v990 = vor.u32 %v986, %v989
        %v991 = vrot.slane %v990, 4
        %v993 = vshll.u32 %v813, 16
        %v995 = vrot.slane %v993, 5
        %v996 = vsel %vm260, %v991, %v995
        %v997 = vshrl.u32 %v813, 16
        %v999 = vrot.slane %v997, 4
        %v1000 = vor.u32 %v999, %v995
        %v1001 = vrot.slane %v1000, 4
        %v1003 = vshll.u32 %v814, 16
        %v1005 = vrot.slane %v1003, 5
        %v1006 = vsel %vm260, %v1001, %v1005
        %1007 = vrot.lane.b32.xlu0 %v828, 16
        %v1008 = vpop.permute.xlu0 %1007
        %1009 = vrot.lane.b32.xlu0 %v838, 16
        %v1010 = vpop.permute.xlu0 %1009
        %1011 = vrot.lane.b32.xlu0 %v852, 16
        %v1012 = vpop.permute.xlu0 %1011
        %1013 = vrot.lane.b32.xlu0 %v862, 16
        %v1014 = vpop.permute.xlu0 %1013
        %1015 = vrot.lane.b32.xlu0 %v876, 16
        %v1016 = vpop.permute.xlu0 %1015
        %1017 = vrot.lane.b32.xlu0 %v886, 16
        %v1018 = vpop.permute.xlu0 %1017
        %1019 = vrot.lane.b32.xlu0 %v900, 16
        %v1020 = vpop.permute.xlu0 %1019
        %1021 = vrot.lane.b32.xlu0 %v910, 16
        %v1022 = vpop.permute.xlu0 %1021
        %1023 = vrot.lane.b32.xlu0 %v924, 16
        %v1024 = vpop.permute.xlu0 %1023
        %1025 = vrot.lane.b32.xlu0 %v934, 16
        %v1026 = vpop.permute.xlu0 %1025
        %1027 = vrot.lane.b32.xlu0 %v948, 16
        %v1028 = vpop.permute.xlu0 %1027
        %1029 = vrot.lane.b32.xlu0 %v958, 16
        %v1030 = vpop.permute.xlu0 %1029
        %1031 = vrot.lane.b32.xlu0 %v972, 16
        %v1032 = vpop.permute.xlu0 %1031
        %1033 = vrot.lane.b32.xlu0 %v982, 16
        %v1034 = vpop.permute.xlu0 %1033
        %1035 = vrot.lane.b32.xlu0 %v996, 16
        %v1036 = vpop.permute.xlu0 %1035
        %1037 = vrot.lane.b32.xlu0 %v1006, 16
        %v1038 = vpop.permute.xlu0 %1037
        %vm1055 = vcmask 158848
        %1056 = vst.msk [vmem:[#allocation2] sm:$0xf] %vm1055, %v1008
        %1057 = vst.msk [vmem:[#allocation2 + $0x4] sm:$0xf] %vm1055, %v1010
        %1058 = vst.msk [vmem:[#allocation2 + $0x8] sm:$0xf] %vm1055, %v1012
        %1059 = vst.msk [vmem:[#allocation2 + $0xc] sm:$0xf] %vm1055, %v1014
        %1060 = vst.msk [vmem:[#allocation2 + $0x10] sm:$0xf] %vm1055, %v1016
        %1061 = vst.msk [vmem:[#allocation2 + $0x14] sm:$0xf] %vm1055, %v1018
        %1062 = vst.msk [vmem:[#allocation2 + $0x18] sm:$0xf] %vm1055, %v1020
        %1063 = vst.msk [vmem:[#allocation2 + $0x1c] sm:$0xf] %vm1055, %v1022
        %1064 = vst.msk [vmem:[#allocation2 + $0x20] sm:$0xf] %vm1055, %v1024
        %1065 = vst.msk [vmem:[#allocation2 + $0x24] sm:$0xf] %vm1055, %v1026
        %1066 = vst.msk [vmem:[#allocation2 + $0x28] sm:$0xf] %vm1055, %v1028
        %1067 = vst.msk [vmem:[#allocation2 + $0x2c] sm:$0xf] %vm1055, %v1030
        %1068 = vst.msk [vmem:[#allocation2 + $0x30] sm:$0xf] %vm1055, %v1032
        %1069 = vst.msk [vmem:[#allocation2 + $0x34] sm:$0xf] %vm1055, %v1034
        %1070 = vst.msk [vmem:[#allocation2 + $0x38] sm:$0xf] %vm1055, %v1036
        %1071 = vst.msk [vmem:[#allocation2 + $0x3c] sm:$0xf] %vm1055, %v1038
        %v1072 = vld [vmem:[%s693] sm:$0xe]
        %v1073 = vld [vmem:[%s693 + $0x4] sm:$0xf]
        %v1074 = vld [vmem:[%s693 + $0x8] sm:$0x1]
        %v1075 = vld [vmem:[%s693 + $0xc] sm:$0xe]
        %v1076 = vld [vmem:[%s693 + $0x10] sm:$0xf]
        %v1077 = vld [vmem:[%s693 + $0x14] sm:$0x1]
        %v1078 = vld [vmem:[%s693 + $0x18] sm:$0xe]
        %v1079 = vld [vmem:[%s693 + $0x1c] sm:$0xf]
        %v1080 = vld [vmem:[%s693 + $0x20] sm:$0x1]
        %v1081 = vld [vmem:[%s693 + $0x24] sm:$0xe]
        %v1082 = vld [vmem:[%s693 + $0x28] sm:$0xf]
        %v1083 = vld [vmem:[%s693 + $0x2c] sm:$0x1]
        %v1084 = vld [vmem:[%s693 + $0x30] sm:$0xe]
        %v1085 = vld [vmem:[%s693 + $0x34] sm:$0xf]
        %v1086 = vld [vmem:[%s693 + $0x38] sm:$0x1]
        %v1087 = vld [vmem:[%s693 + $0x3c] sm:$0xe]
        %v1088 = vld [vmem:[%s693 + $0x40] sm:$0xf]
        %v1089 = vld [vmem:[%s693 + $0x44] sm:$0x1]
        %v1090 = vld [vmem:[%s693 + $0x48] sm:$0xe]
        %v1091 = vld [vmem:[%s693 + $0x4c] sm:$0xf]
        %v1092 = vld [vmem:[%s693 + $0x50] sm:$0x1]
        %v1093 = vld [vmem:[%s693 + $0x54] sm:$0xe]
        %v1094 = vld [vmem:[%s693 + $0x58] sm:$0xf]
        %v1095 = vld [vmem:[%s693 + $0x5c] sm:$0x1]
        %v1120 = vrot.slane %v1072, 5
        %v1121 = vrot.slane %v1120, 4
        %v1122 = vrot.slane %v1073, 5
        %v1123 = vsel %vm568, %v1121, %v1122
        %v1124 = vrot.slane %v1122, 4
        %v1125 = vrot.slane %v1074, 5
        %v1126 = vsel %vm568, %v1124, %v1125
        %v1127 = vrot.slane %v1075, 5
        %v1128 = vrot.slane %v1127, 4
        %v1129 = vrot.slane %v1076, 5
        %v1130 = vsel %vm568, %v1128, %v1129
        %v1131 = vrot.slane %v1129, 4
        %v1132 = vrot.slane %v1077, 5
        %v1133 = vsel %vm568, %v1131, %v1132
        %v1134 = vrot.slane %v1078, 5
        %v1135 = vrot.slane %v1134, 4
        %v1136 = vrot.slane %v1079, 5
        %v1137 = vsel %vm568, %v1135, %v1136
        %v1138 = vrot.slane %v1136, 4
        %v1139 = vrot.slane %v1080, 5
        %v1140 = vsel %vm568, %v1138, %v1139
        %v1141 = vrot.slane %v1081, 5
        %v1142 = vrot.slane %v1141, 4
        %v1143 = vrot.slane %v1082, 5
        %v1144 = vsel %vm568, %v1142, %v1143
        %v1145 = vrot.slane %v1143, 4
        %v1146 = vrot.slane %v1083, 5
        %v1147 = vsel %vm568, %v1145, %v1146
        %v1148 = vrot.slane %v1084, 5
        %v1149 = vrot.slane %v1148, 4
        %v1150 = vrot.slane %v1085, 5
        %v1151 = vsel %vm568, %v1149, %v1150
        %v1152 = vrot.slane %v1150, 4
        %v1153 = vrot.slane %v1086, 5
        %v1154 = vsel %vm568, %v1152, %v1153
        %v1155 = vrot.slane %v1087, 5
        %v1156 = vrot.slane %v1155, 4
        %v1157 = vrot.slane %v1088, 5
        %v1158 = vsel %vm568, %v1156, %v1157
        %v1159 = vrot.slane %v1157, 4
        %v1160 = vrot.slane %v1089, 5
        %v1161 = vsel %vm568, %v1159, %v1160
        %v1162 = vrot.slane %v1090, 5
        %v1163 = vrot.slane %v1162, 4
        %v1164 = vrot.slane %v1091, 5
        %v1165 = vsel %vm568, %v1163, %v1164
        %v1166 = vrot.slane %v1164, 4
        %v1167 = vrot.slane %v1092, 5
        %v1168 = vsel %vm568, %v1166, %v1167
        %v1169 = vrot.slane %v1093, 5
        %v1170 = vrot.slane %v1169, 4
        %v1171 = vrot.slane %v1094, 5
        %v1172 = vsel %vm568, %v1170, %v1171
        %v1173 = vrot.slane %v1171, 4
        %v1174 = vrot.slane %v1095, 5
        %v1175 = vsel %vm568, %v1173, %v1174
        %1176 = vrot.lane.b32.xlu0 %v1123, 20
        %v1177 = vpop.permute.xlu0 %1176
        %1178 = vrot.lane.b32.xlu0 %v1126, 20
        %v1179 = vpop.permute.xlu0 %1178
        %1180 = vrot.lane.b32.xlu0 %v1130, 20
        %v1181 = vpop.permute.xlu0 %1180
        %1182 = vrot.lane.b32.xlu0 %v1133, 20
        %v1183 = vpop.permute.xlu0 %1182
        %1184 = vrot.lane.b32.xlu0 %v1137, 20
        %v1185 = vpop.permute.xlu0 %1184
        %1186 = vrot.lane.b32.xlu0 %v1140, 20
        %v1187 = vpop.permute.xlu0 %1186
        %1188 = vrot.lane.b32.xlu0 %v1144, 20
        %v1189 = vpop.permute.xlu0 %1188
        %1190 = vrot.lane.b32.xlu0 %v1147, 20
        %v1191 = vpop.permute.xlu0 %1190
        %1192 = vrot.lane.b32.xlu0 %v1151, 20
        %v1193 = vpop.permute.xlu0 %1192
        %1194 = vrot.lane.b32.xlu0 %v1154, 20
        %v1195 = vpop.permute.xlu0 %1194
        %1196 = vrot.lane.b32.xlu0 %v1158, 20
        %v1197 = vpop.permute.xlu0 %1196
        %1198 = vrot.lane.b32.xlu0 %v1161, 20
        %v1199 = vpop.permute.xlu0 %1198
        %1200 = vrot.lane.b32.xlu0 %v1165, 20
        %v1201 = vpop.permute.xlu0 %1200
        %1202 = vrot.lane.b32.xlu0 %v1168, 20
        %v1203 = vpop.permute.xlu0 %1202
        %1204 = vrot.lane.b32.xlu0 %v1172, 20
        %v1205 = vpop.permute.xlu0 %1204
        %1206 = vrot.lane.b32.xlu0 %v1175, 20
        %v1207 = vpop.permute.xlu0 %1206
        %vm1224 = vcmask 191648
        %1225 = vst.msk [vmem:[#allocation2] sm:$0xf] %vm1224, %v1177
        %1226 = vst.msk [vmem:[#allocation2 + $0x4] sm:$0xf] %vm1224, %v1179
        %1227 = vst.msk [vmem:[#allocation2 + $0x8] sm:$0xf] %vm1224, %v1181
        %1228 = vst.msk [vmem:[#allocation2 + $0xc] sm:$0xf] %vm1224, %v1183
        %1229 = vst.msk [vmem:[#allocation2 + $0x10] sm:$0xf] %vm1224, %v1185
        %1230 = vst.msk [vmem:[#allocation2 + $0x14] sm:$0xf] %vm1224, %v1187
        %1231 = vst.msk [vmem:[#allocation2 + $0x18] sm:$0xf] %vm1224, %v1189
        %1232 = vst.msk [vmem:[#allocation2 + $0x1c] sm:$0xf] %vm1224, %v1191
        %1233 = vst.msk [vmem:[#allocation2 + $0x20] sm:$0xf] %vm1224, %v1193
        %1234 = vst.msk [vmem:[#allocation2 + $0x24] sm:$0xf] %vm1224, %v1195
        %1235 = vst.msk [vmem:[#allocation2 + $0x28] sm:$0xf] %vm1224, %v1197
        %1236 = vst.msk [vmem:[#allocation2 + $0x2c] sm:$0xf] %vm1224, %v1199
        %1237 = vst.msk [vmem:[#allocation2 + $0x30] sm:$0xf] %vm1224, %v1201
        %1238 = vst.msk [vmem:[#allocation2 + $0x34] sm:$0xf] %vm1224, %v1203
        %1239 = vst.msk [vmem:[#allocation2 + $0x38] sm:$0xf] %vm1224, %v1205
        %1240 = vst.msk [vmem:[#allocation2 + $0x3c] sm:$0xf] %vm1224, %v1207
        %s1241 = sadd.s32 %s197, 2
        %s1242 = smul.u32 %s1241, 3
        %s1243 = smul.addr %s1242, 4
        %s1244 = scalar_lea.vmem %s195, %s1243
        %v1245 = vld [vmem:[%s1244] sm:$0xf]
        %v1246 = vld [vmem:[%s1244 + $0x4] sm:$0xf]
        %v1247 = vld [vmem:[%s1244 + $0xc] sm:$0xf]
        %v1248 = vld [vmem:[%s1244 + $0x10] sm:$0xf]
        %v1249 = vld [vmem:[%s1244 + $0x18] sm:$0xf]
        %v1250 = vld [vmem:[%s1244 + $0x1c] sm:$0xf]
        %v1251 = vld [vmem:[%s1244 + $0x24] sm:$0xf]
        %v1252 = vld [vmem:[%s1244 + $0x28] sm:$0xf]
        %v1253 = vld [vmem:[%s1244 + $0x30] sm:$0xf]
        %v1254 = vld [vmem:[%s1244 + $0x34] sm:$0xf]
        %v1255 = vld [vmem:[%s1244 + $0x3c] sm:$0xf]
        %v1256 = vld [vmem:[%s1244 + $0x40] sm:$0xf]
        %v1257 = vld [vmem:[%s1244 + $0x48] sm:$0xf]
        %v1258 = vld [vmem:[%s1244 + $0x4c] sm:$0xf]
        %v1259 = vld [vmem:[%s1244 + $0x54] sm:$0xf]
        %v1260 = vld [vmem:[%s1244 + $0x58] sm:$0xf]
        %1277 = vrot.lane.b32.xlu0 %v1245, 24
        %v1278 = vpop.permute.xlu0 %1277
        %1279 = vrot.lane.b32.xlu0 %v1246, 24
        %v1280 = vpop.permute.xlu0 %1279
        %1281 = vrot.lane.b32.xlu0 %v1247, 24
        %v1282 = vpop.permute.xlu0 %1281
        %1283 = vrot.lane.b32.xlu0 %v1248, 24
        %v1284 = vpop.permute.xlu0 %1283
        %1285 = vrot.lane.b32.xlu0 %v1249, 24
        %v1286 = vpop.permute.xlu0 %1285
        %1287 = vrot.lane.b32.xlu0 %v1250, 24
        %v1288 = vpop.permute.xlu0 %1287
        %1289 = vrot.lane.b32.xlu0 %v1251, 24
        %v1290 = vpop.permute.xlu0 %1289
        %1291 = vrot.lane.b32.xlu0 %v1252, 24
        %v1292 = vpop.permute.xlu0 %1291
        %1293 = vrot.lane.b32.xlu0 %v1253, 24
        %v1294 = vpop.permute.xlu0 %1293
        %1295 = vrot.lane.b32.xlu0 %v1254, 24
        %v1296 = vpop.permute.xlu0 %1295
        %1297 = vrot.lane.b32.xlu0 %v1255, 24
        %v1298 = vpop.permute.xlu0 %1297
        %1299 = vrot.lane.b32.xlu0 %v1256, 24
        %v1300 = vpop.permute.xlu0 %1299
        %1301 = vrot.lane.b32.xlu0 %v1257, 24
        %v1302 = vpop.permute.xlu0 %1301
        %1303 = vrot.lane.b32.xlu0 %v1258, 24
        %v1304 = vpop.permute.xlu0 %1303
        %1305 = vrot.lane.b32.xlu0 %v1259, 24
        %v1306 = vpop.permute.xlu0 %1305
        %1307 = vrot.lane.b32.xlu0 %v1260, 24
        %v1308 = vpop.permute.xlu0 %1307
        %vm1325 = vcmask 224448
        %1326 = vst.msk [vmem:[#allocation2] sm:$0xf] %vm1325, %v1278
        %1327 = vst.msk [vmem:[#allocation2 + $0x4] sm:$0xf] %vm1325, %v1280
        %1328 = vst.msk [vmem:[#allocation2 + $0x8] sm:$0xf] %vm1325, %v1282
        %1329 = vst.msk [vmem:[#allocation2 + $0xc] sm:$0xf] %vm1325, %v1284
        %1330 = vst.msk [vmem:[#allocation2 + $0x10] sm:$0xf] %vm1325, %v1286
        %1331 = vst.msk [vmem:[#allocation2 + $0x14] sm:$0xf] %vm1325, %v1288
        %1332 = vst.msk [vmem:[#allocation2 + $0x18] sm:$0xf] %vm1325, %v1290
        %1333 = vst.msk [vmem:[#allocation2 + $0x1c] sm:$0xf] %vm1325, %v1292
        %1334 = vst.msk [vmem:[#allocation2 + $0x20] sm:$0xf] %vm1325, %v1294
        %1335 = vst.msk [vmem:[#allocation2 + $0x24] sm:$0xf] %vm1325, %v1296
        %1336 = vst.msk [vmem:[#allocation2 + $0x28] sm:$0xf] %vm1325, %v1298
        %1337 = vst.msk [vmem:[#allocation2 + $0x2c] sm:$0xf] %vm1325, %v1300
        %1338 = vst.msk [vmem:[#allocation2 + $0x30] sm:$0xf] %vm1325, %v1302
        %1339 = vst.msk [vmem:[#allocation2 + $0x34] sm:$0xf] %vm1325, %v1304
        %1340 = vst.msk [vmem:[#allocation2 + $0x38] sm:$0xf] %vm1325, %v1306
        %1341 = vst.msk [vmem:[#allocation2 + $0x3c] sm:$0xf] %vm1325, %v1308
        %v1342 = vld [vmem:[%s1244] sm:$0xf]
        %v1343 = vld [vmem:[%s1244 + $0x4] sm:$0xf]
        %v1344 = vld [vmem:[%s1244 + $0x8] sm:$0x1]
        %v1345 = vld [vmem:[%s1244 + $0xc] sm:$0xf]
        %v1346 = vld [vmem:[%s1244 + $0x10] sm:$0xf]
        %v1347 = vld [vmem:[%s1244 + $0x14] sm:$0x1]
        %v1348 = vld [vmem:[%s1244 + $0x18] sm:$0xf]
        %v1349 = vld [vmem:[%s1244 + $0x1c] sm:$0xf]
        %v1350 = vld [vmem:[%s1244 + $0x20] sm:$0x1]
        %v1351 = vld [vmem:[%s1244 + $0x24] sm:$0xf]
        %v1352 = vld [vmem:[%s1244 + $0x28] sm:$0xf]
        %v1353 = vld [vmem:[%s1244 + $0x2c] sm:$0x1]
        %v1354 = vld [vmem:[%s1244 + $0x30] sm:$0xf]
        %v1355 = vld [vmem:[%s1244 + $0x34] sm:$0xf]
        %v1356 = vld [vmem:[%s1244 + $0x38] sm:$0x1]
        %v1357 = vld [vmem:[%s1244 + $0x3c] sm:$0xf]
        %v1358 = vld [vmem:[%s1244 + $0x40] sm:$0xf]
        %v1359 = vld [vmem:[%s1244 + $0x44] sm:$0x1]
        %v1360 = vld [vmem:[%s1244 + $0x48] sm:$0xf]
        %v1361 = vld [vmem:[%s1244 + $0x4c] sm:$0xf]
        %v1362 = vld [vmem:[%s1244 + $0x50] sm:$0x1]
        %v1363 = vld [vmem:[%s1244 + $0x54] sm:$0xf]
        %v1364 = vld [vmem:[%s1244 + $0x58] sm:$0xf]
        %v1365 = vld [vmem:[%s1244 + $0x5c] sm:$0x1]
        %v1367 = vshrl.u32 %v1342, 16
        %v1369 = vrot.slane %v1367, 4
        %v1370 = vshll.u32 %v1342, 16
        %v1372 = vrot.slane %v1370, 5
        %v1373 = vor.u32 %v1369, %v1372
        %v1374 = vrot.slane %v1373, 4
        %v1376 = vshll.u32 %v1343, 16
        %v1378 = vrot.slane %v1376, 5
        %v1379 = vsel %vm260, %v1374, %v1378
        %v1380 = vshrl.u32 %v1343, 16
        %v1382 = vrot.slane %v1380, 4
        %v1383 = vor.u32 %v1382, %v1378
        %v1384 = vrot.slane %v1383, 4
        %v1386 = vshll.u32 %v1344, 16
        %v1388 = vrot.slane %v1386, 5
        %v1389 = vsel %vm260, %v1384, %v1388
        %v1391 = vshrl.u32 %v1345, 16
        %v1393 = vrot.slane %v1391, 4
        %v1394 = vshll.u32 %v1345, 16
        %v1396 = vrot.slane %v1394, 5
        %v1397 = vor.u32 %v1393, %v1396
        %v1398 = vrot.slane %v1397, 4
        %v1400 = vshll.u32 %v1346, 16
        %v1402 = vrot.slane %v1400, 5
        %v1403 = vsel %vm260, %v1398, %v1402
        %v1404 = vshrl.u32 %v1346, 16
        %v1406 = vrot.slane %v1404, 4
        %v1407 = vor.u32 %v1406, %v1402
        %v1408 = vrot.slane %v1407, 4
        %v1410 = vshll.u32 %v1347, 16
        %v1412 = vrot.slane %v1410, 5
        %v1413 = vsel %vm260, %v1408, %v1412
        %v1415 = vshrl.u32 %v1348, 16
        %v1417 = vrot.slane %v1415, 4
        %v1418 = vshll.u32 %v1348, 16
        %v1420 = vrot.slane %v1418, 5
        %v1421 = vor.u32 %v1417, %v1420
        %v1422 = vrot.slane %v1421, 4
        %v1424 = vshll.u32 %v1349, 16
        %v1426 = vrot.slane %v1424, 5
        %v1427 = vsel %vm260, %v1422, %v1426
        %v1428 = vshrl.u32 %v1349, 16
        %v1430 = vrot.slane %v1428, 4
        %v1431 = vor.u32 %v1430, %v1426
        %v1432 = vrot.slane %v1431, 4
        %v1434 = vshll.u32 %v1350, 16
        %v1436 = vrot.slane %v1434, 5
        %v1437 = vsel %vm260, %v1432, %v1436
        %v1439 = vshrl.u32 %v1351, 16
        %v1441 = vrot.slane %v1439, 4
        %v1442 = vshll.u32 %v1351, 16
        %v1444 = vrot.slane %v1442, 5
        %v1445 = vor.u32 %v1441, %v1444
        %v1446 = vrot.slane %v1445, 4
        %v1448 = vshll.u32 %v1352, 16
        %v1450 = vrot.slane %v1448, 5
        %v1451 = vsel %vm260, %v1446, %v1450
        %v1452 = vshrl.u32 %v1352, 16
        %v1454 = vrot.slane %v1452, 4
        %v1455 = vor.u32 %v1454, %v1450
        %v1456 = vrot.slane %v1455, 4
        %v1458 = vshll.u32 %v1353, 16
        %v1460 = vrot.slane %v1458, 5
        %v1461 = vsel %vm260, %v1456, %v1460
        %v1463 = vshrl.u32 %v1354, 16
        %v1465 = vrot.slane %v1463, 4
        %v1466 = vshll.u32 %v1354, 16
        %v1468 = vrot.slane %v1466, 5
        %v1469 = vor.u32 %v1465, %v1468
        %v1470 = vrot.slane %v1469, 4
        %v1472 = vshll.u32 %v1355, 16
        %v1474 = vrot.slane %v1472, 5
        %v1475 = vsel %vm260, %v1470, %v1474
        %v1476 = vshrl.u32 %v1355, 16
        %v1478 = vrot.slane %v1476, 4
        %v1479 = vor.u32 %v1478, %v1474
        %v1480 = vrot.slane %v1479, 4
        %v1482 = vshll.u32 %v1356, 16
        %v1484 = vrot.slane %v1482, 5
        %v1485 = vsel %vm260, %v1480, %v1484
        %v1487 = vshrl.u32 %v1357, 16
        %v1489 = vrot.slane %v1487, 4
        %v1490 = vshll.u32 %v1357, 16
        %v1492 = vrot.slane %v1490, 5
        %v1493 = vor.u32 %v1489, %v1492
        %v1494 = vrot.slane %v1493, 4
        %v1496 = vshll.u32 %v1358, 16
        %v1498 = vrot.slane %v1496, 5
        %v1499 = vsel %vm260, %v1494, %v1498
        %v1500 = vshrl.u32 %v1358, 16
        %v1502 = vrot.slane %v1500, 4
        %v1503 = vor.u32 %v1502, %v1498
        %v1504 = vrot.slane %v1503, 4
        %v1506 = vshll.u32 %v1359, 16
        %v1508 = vrot.slane %v1506, 5
        %v1509 = vsel %vm260, %v1504, %v1508
        %v1511 = vshrl.u32 %v1360, 16
        %v1513 = vrot.slane %v1511, 4
        %v1514 = vshll.u32 %v1360, 16
        %v1516 = vrot.slane %v1514, 5
        %v1517 = vor.u32 %v1513, %v1516
        %v1518 = vrot.slane %v1517, 4
        %v1520 = vshll.u32 %v1361, 16
        %v1522 = vrot.slane %v1520, 5
        %v1523 = vsel %vm260, %v1518, %v1522
        %v1524 = vshrl.u32 %v1361, 16
        %v1526 = vrot.slane %v1524, 4
        %v1527 = vor.u32 %v1526, %v1522
        %v1528 = vrot.slane %v1527, 4
        %v1530 = vshll.u32 %v1362, 16
        %v1532 = vrot.slane %v1530, 5
        %v1533 = vsel %vm260, %v1528, %v1532
        %v1535 = vshrl.u32 %v1363, 16
        %v1537 = vrot.slane %v1535, 4
        %v1538 = vshll.u32 %v1363, 16
        %v1540 = vrot.slane %v1538, 5
        %v1541 = vor.u32 %v1537, %v1540
        %v1542 = vrot.slane %v1541, 4
        %v1544 = vshll.u32 %v1364, 16
        %v1546 = vrot.slane %v1544, 5
        %v1547 = vsel %vm260, %v1542, %v1546
        %v1548 = vshrl.u32 %v1364, 16
        %v1550 = vrot.slane %v1548, 4
        %v1551 = vor.u32 %v1550, %v1546
        %v1552 = vrot.slane %v1551, 4
        %v1554 = vshll.u32 %v1365, 16
        %v1556 = vrot.slane %v1554, 5
        %v1557 = vsel %vm260, %v1552, %v1556
        %1558 = vrot.lane.b32.xlu0 %v1379, 28
        %v1559 = vpop.permute.xlu0 %1558
        %1560 = vrot.lane.b32.xlu0 %v1389, 28
        %v1561 = vpop.permute.xlu0 %1560
        %1562 = vrot.lane.b32.xlu0 %v1403, 28
        %v1563 = vpop.permute.xlu0 %1562
        %1564 = vrot.lane.b32.xlu0 %v1413, 28
        %v1565 = vpop.permute.xlu0 %1564
        %1566 = vrot.lane.b32.xlu0 %v1427, 28
        %v1567 = vpop.permute.xlu0 %1566
        %1568 = vrot.lane.b32.xlu0 %v1437, 28
        %v1569 = vpop.permute.xlu0 %1568
        %1570 = vrot.lane.b32.xlu0 %v1451, 28
        %v1571 = vpop.permute.xlu0 %1570
        %1572 = vrot.lane.b32.xlu0 %v1461, 28
        %v1573 = vpop.permute.xlu0 %1572
        %1574 = vrot.lane.b32.xlu0 %v1475, 28
        %v1575 = vpop.permute.xlu0 %1574
        %1576 = vrot.lane.b32.xlu0 %v1485, 28
        %v1577 = vpop.permute.xlu0 %1576
        %1578 = vrot.lane.b32.xlu0 %v1499, 28
        %v1579 = vpop.permute.xlu0 %1578
        %1580 = vrot.lane.b32.xlu0 %v1509, 28
        %v1581 = vpop.permute.xlu0 %1580
        %1582 = vrot.lane.b32.xlu0 %v1523, 28
        %v1583 = vpop.permute.xlu0 %1582
        %1584 = vrot.lane.b32.xlu0 %v1533, 28
        %v1585 = vpop.permute.xlu0 %1584
        %1586 = vrot.lane.b32.xlu0 %v1547, 28
        %v1587 = vpop.permute.xlu0 %1586
        %1588 = vrot.lane.b32.xlu0 %v1557, 28
        %v1589 = vpop.permute.xlu0 %1588
        %vm1606 = vcmask 257248
        %1607 = vst.msk [vmem:[#allocation2] sm:$0xf] %vm1606, %v1559
        %1608 = vst.msk [vmem:[#allocation2 + $0x4] sm:$0xf] %vm1606, %v1561
        %1609 = vst.msk [vmem:[#allocation2 + $0x8] sm:$0xf] %vm1606, %v1563
        %1610 = vst.msk [vmem:[#allocation2 + $0xc] sm:$0xf] %vm1606, %v1565
        %1611 = vst.msk [vmem:[#allocation2 + $0x10] sm:$0xf] %vm1606, %v1567
        %1612 = vst.msk [vmem:[#allocation2 + $0x14] sm:$0xf] %vm1606, %v1569
        %1613 = vst.msk [vmem:[#allocation2 + $0x18] sm:$0xf] %vm1606, %v1571
        %1614 = vst.msk [vmem:[#allocation2 + $0x1c] sm:$0xf] %vm1606, %v1573
        %1615 = vst.msk [vmem:[#allocation2 + $0x20] sm:$0xf] %vm1606, %v1575
        %1616 = vst.msk [vmem:[#allocation2 + $0x24] sm:$0xf] %vm1606, %v1577
        %1617 = vst.msk [vmem:[#allocation2 + $0x28] sm:$0xf] %vm1606, %v1579
        %1618 = vst.msk [vmem:[#allocation2 + $0x2c] sm:$0xf] %vm1606, %v1581
        %1619 = vst.msk [vmem:[#allocation2 + $0x30] sm:$0xf] %vm1606, %v1583
        %1620 = vst.msk [vmem:[#allocation2 + $0x34] sm:$0xf] %vm1606, %v1585
        %1621 = vst.msk [vmem:[#allocation2 + $0x38] sm:$0xf] %vm1606, %v1587
        %1622 = vst.msk [vmem:[#allocation2 + $0x3c] sm:$0xf] %vm1606, %v1589
        %v1623 = vld [vmem:[%s1244] sm:$0xe]
        %v1624 = vld [vmem:[%s1244 + $0x4] sm:$0xf]
        %v1625 = vld [vmem:[%s1244 + $0x8] sm:$0x1]
        %v1626 = vld [vmem:[%s1244 + $0xc] sm:$0xe]
        %v1627 = vld [vmem:[%s1244 + $0x10] sm:$0xf]
        %v1628 = vld [vmem:[%s1244 + $0x14] sm:$0x1]
        %v1629 = vld [vmem:[%s1244 + $0x18] sm:$0xe]
        %v1630 = vld [vmem:[%s1244 + $0x1c] sm:$0xf]
        %v1631 = vld [vmem:[%s1244 + $0x20] sm:$0x1]
        %v1632 = vld [vmem:[%s1244 + $0x24] sm:$0xe]
        %v1633 = vld [vmem:[%s1244 + $0x28] sm:$0xf]
        %v1634 = vld [vmem:[%s1244 + $0x2c] sm:$0x1]
        %v1635 = vld [vmem:[%s1244 + $0x30] sm:$0xe]
        %v1636 = vld [vmem:[%s1244 + $0x34] sm:$0xf]
        %v1637 = vld [vmem:[%s1244 + $0x38] sm:$0x1]
        %v1638 = vld [vmem:[%s1244 + $0x3c] sm:$0xe]
        %v1639 = vld [vmem:[%s1244 + $0x40] sm:$0xf]
        %v1640 = vld [vmem:[%s1244 + $0x44] sm:$0x1]
        %v1641 = vld [vmem:[%s1244 + $0x48] sm:$0xe]
        %v1642 = vld [vmem:[%s1244 + $0x4c] sm:$0xf]
        %v1643 = vld [vmem:[%s1244 + $0x50] sm:$0x1]
        %v1644 = vld [vmem:[%s1244 + $0x54] sm:$0xe]
        %v1645 = vld [vmem:[%s1244 + $0x58] sm:$0xf]
        %v1646 = vld [vmem:[%s1244 + $0x5c] sm:$0x1]
        %v1671 = vrot.slane %v1623, 5
        %v1672 = vrot.slane %v1671, 4
        %v1673 = vrot.slane %v1624, 5
        %v1674 = vsel %vm568, %v1672, %v1673
        %v1675 = vrot.slane %v1673, 4
        %v1676 = vrot.slane %v1625, 5
        %v1677 = vsel %vm568, %v1675, %v1676
        %v1678 = vrot.slane %v1626, 5
        %v1679 = vrot.slane %v1678, 4
        %v1680 = vrot.slane %v1627, 5
        %v1681 = vsel %vm568, %v1679, %v1680
        %v1682 = vrot.slane %v1680, 4
        %v1683 = vrot.slane %v1628, 5
        %v1684 = vsel %vm568, %v1682, %v1683
        %v1685 = vrot.slane %v1629, 5
        %v1686 = vrot.slane %v1685, 4
        %v1687 = vrot.slane %v1630, 5
        %v1688 = vsel %vm568, %v1686, %v1687
        %v1689 = vrot.slane %v1687, 4
        %v1690 = vrot.slane %v1631, 5
        %v1691 = vsel %vm568, %v1689, %v1690
        %v1692 = vrot.slane %v1632, 5
        %v1693 = vrot.slane %v1692, 4
        %v1694 = vrot.slane %v1633, 5
        %v1695 = vsel %vm568, %v1693, %v1694
        %v1696 = vrot.slane %v1694, 4
        %v1697 = vrot.slane %v1634, 5
        %v1698 = vsel %vm568, %v1696, %v1697
        %v1699 = vrot.slane %v1635, 5
        %v1700 = vrot.slane %v1699, 4
        %v1701 = vrot.slane %v1636, 5
        %v1702 = vsel %vm568, %v1700, %v1701
        %v1703 = vrot.slane %v1701, 4
        %v1704 = vrot.slane %v1637, 5
        %v1705 = vsel %vm568, %v1703, %v1704
        %v1706 = vrot.slane %v1638, 5
        %v1707 = vrot.slane %v1706, 4
        %v1708 = vrot.slane %v1639, 5
        %v1709 = vsel %vm568, %v1707, %v1708
        %v1710 = vrot.slane %v1708, 4
        %v1711 = vrot.slane %v1640, 5
        %v1712 = vsel %vm568, %v1710, %v1711
        %v1713 = vrot.slane %v1641, 5
        %v1714 = vrot.slane %v1713, 4
        %v1715 = vrot.slane %v1642, 5
        %v1716 = vsel %vm568, %v1714, %v1715
        %v1717 = vrot.slane %v1715, 4
        %v1718 = vrot.slane %v1643, 5
        %v1719 = vsel %vm568, %v1717, %v1718
        %v1720 = vrot.slane %v1644, 5
        %v1721 = vrot.slane %v1720, 4
        %v1722 = vrot.slane %v1645, 5
        %v1723 = vsel %vm568, %v1721, %v1722
        %v1724 = vrot.slane %v1722, 4
        %v1725 = vrot.slane %v1646, 5
        %v1726 = vsel %vm568, %v1724, %v1725
        %1727 = vrot.lane.b32.xlu0 %v1674, 32
        %v1728 = vpop.permute.xlu0 %1727
        %1729 = vrot.lane.b32.xlu0 %v1677, 32
        %v1730 = vpop.permute.xlu0 %1729
        %1731 = vrot.lane.b32.xlu0 %v1681, 32
        %v1732 = vpop.permute.xlu0 %1731
        %1733 = vrot.lane.b32.xlu0 %v1684, 32
        %v1734 = vpop.permute.xlu0 %1733
        %1735 = vrot.lane.b32.xlu0 %v1688, 32
        %v1736 = vpop.permute.xlu0 %1735
        %1737 = vrot.lane.b32.xlu0 %v1691, 32
        %v1738 = vpop.permute.xlu0 %1737
        %1739 = vrot.lane.b32.xlu0 %v1695, 32
        %v1740 = vpop.permute.xlu0 %1739
        %1741 = vrot.lane.b32.xlu0 %v1698, 32
        %v1742 = vpop.permute.xlu0 %1741
        %1743 = vrot.lane.b32.xlu0 %v1702, 32
        %v1744 = vpop.permute.xlu0 %1743
        %1745 = vrot.lane.b32.xlu0 %v1705, 32
        %v1746 = vpop.permute.xlu0 %1745
        %1747 = vrot.lane.b32.xlu0 %v1709, 32
        %v1748 = vpop.permute.xlu0 %1747
        %1749 = vrot.lane.b32.xlu0 %v1712, 32
        %v1750 = vpop.permute.xlu0 %1749
        %1751 = vrot.lane.b32.xlu0 %v1716, 32
        %v1752 = vpop.permute.xlu0 %1751
        %1753 = vrot.lane.b32.xlu0 %v1719, 32
        %v1754 = vpop.permute.xlu0 %1753
        %1755 = vrot.lane.b32.xlu0 %v1723, 32
        %v1756 = vpop.permute.xlu0 %1755
        %1757 = vrot.lane.b32.xlu0 %v1726, 32
        %v1758 = vpop.permute.xlu0 %1757
        %vm1775 = vcmask 290048
        %1776 = vst.msk [vmem:[#allocation2] sm:$0xf] %vm1775, %v1728
        %1777 = vst.msk [vmem:[#allocation2 + $0x4] sm:$0xf] %vm1775, %v1730
        %1778 = vst.msk [vmem:[#allocation2 + $0x8] sm:$0xf] %vm1775, %v1732
        %1779 = vst.msk [vmem:[#allocation2 + $0xc] sm:$0xf] %vm1775, %v1734
        %1780 = vst.msk [vmem:[#allocation2 + $0x10] sm:$0xf] %vm1775, %v1736
        %1781 = vst.msk [vmem:[#allocation2 + $0x14] sm:$0xf] %vm1775, %v1738
        %1782 = vst.msk [vmem:[#allocation2 + $0x18] sm:$0xf] %vm1775, %v1740
        %1783 = vst.msk [vmem:[#allocation2 + $0x1c] sm:$0xf] %vm1775, %v1742
        %1784 = vst.msk [vmem:[#allocation2 + $0x20] sm:$0xf] %vm1775, %v1744
        %1785 = vst.msk [vmem:[#allocation2 + $0x24] sm:$0xf] %vm1775, %v1746
        %1786 = vst.msk [vmem:[#allocation2 + $0x28] sm:$0xf] %vm1775, %v1748
        %1787 = vst.msk [vmem:[#allocation2 + $0x2c] sm:$0xf] %vm1775, %v1750
        %1788 = vst.msk [vmem:[#allocation2 + $0x30] sm:$0xf] %vm1775, %v1752
        %1789 = vst.msk [vmem:[#allocation2 + $0x34] sm:$0xf] %vm1775, %v1754
        %1790 = vst.msk [vmem:[#allocation2 + $0x38] sm:$0xf] %vm1775, %v1756
        %1791 = vst.msk [vmem:[#allocation2 + $0x3c] sm:$0xf] %vm1775, %v1758
        %v1792 = vld [vmem:[#allocation2] sm:$0xf]
        %v1793 = vld [vmem:[#allocation2 + $0x4] sm:$0xf]
        %v1794 = vld [vmem:[#allocation2 + $0x8] sm:$0xf]
        %v1795 = vld [vmem:[#allocation2 + $0xc] sm:$0xf]
        %v1796 = vld [vmem:[#allocation2 + $0x10] sm:$0xf]
        %v1797 = vld [vmem:[#allocation2 + $0x14] sm:$0xf]
        %v1798 = vld [vmem:[#allocation2 + $0x18] sm:$0xf]
        %v1799 = vld [vmem:[#allocation2 + $0x1c] sm:$0xf]
        %v1800 = vld [vmem:[#allocation2 + $0x20] sm:$0xf]
        %v1801 = vld [vmem:[#allocation2 + $0x24] sm:$0xf]
        %v1802 = vld [vmem:[#allocation2 + $0x28] sm:$0xf]
        %v1803 = vld [vmem:[#allocation2 + $0x2c] sm:$0xf]
        %v1804 = vld [vmem:[#allocation2 + $0x30] sm:$0xf]
        %v1805 = vld [vmem:[#allocation2 + $0x34] sm:$0xf]
        %v1806 = vld [vmem:[#allocation2 + $0x38] sm:$0xf]
        %v1807 = vld [vmem:[#allocation2 + $0x3c] sm:$0xf]
        %v1808 = vld [vmem:[%s1] sm:$0xf]
        %v1809 = vld [vmem:[%s1 + $0x4] sm:$0xf]
        %v1810 = vld [vmem:[%s1 + $0x8] sm:$0xf]
        %v1811 = vld [vmem:[%s1 + $0xc] sm:$0xf]
        %v1812 = vld [vmem:[%s1 + $0x10] sm:$0x3]
        %v1829 = vunpack.c.l.b16 %v1792
        %v1830 = vunpack.c.l.b16 %v1793
        %v1831 = vunpack.c.l.b16 %v1794
        %v1832 = vunpack.c.l.b16 %v1795
        %v1833 = vunpack.c.l.b16 %v1796
        %v1834 = vunpack.c.l.b16 %v1797
        %v1835 = vunpack.c.l.b16 %v1798
        %v1836 = vunpack.c.l.b16 %v1799
        %v1837 = vunpack.c.l.b16 %v1800
        %v1838 = vunpack.c.l.b16 %v1801
        %v1839 = vunpack.c.l.b16 %v1802
        %v1840 = vunpack.c.l.b16 %v1803
        %v1841 = vunpack.c.l.b16 %v1804
        %v1842 = vunpack.c.l.b16 %v1805
        %v1843 = vunpack.c.l.b16 %v1806
        %v1844 = vunpack.c.l.b16 %v1807
        %v1845 = vpack.c.b16 %v1830, %v1829
        %v1846 = vpack.c.b16 %v1832, %v1831
        %v1847 = vpack.c.b16 %v1834, %v1833
        %v1848 = vpack.c.b16 %v1836, %v1835
        %v1849 = vpack.c.b16 %v1838, %v1837
        %v1850 = vpack.c.b16 %v1840, %v1839
        %v1851 = vpack.c.b16 %v1842, %v1841
        %v1852 = vpack.c.b16 %v1844, %v1843
        %v1858 = vunpack.c.l.b16 %v1808
        %v1859 = vunpack.c.l.b16 %v1809
        %v1860 = vunpack.c.l.b16 %v1810
        %v1861 = vunpack.c.l.b16 %v1811
        %v1862 = vunpack.c.l.b16 %v1812
        %v1863 = vpack.c.b16 %v1859, %v1858
        %v1864 = vpack.c.b16 %v1861, %v1860
        %v1865 = vpack.c.b16 %v1862, %v1862
        %vm1868 = vcmask 293888
        %v1870 = vsel %vm1868, %v1845, 0
        %v1873 = vsel %vm1868, %v1846, 0
        %v1876 = vsel %vm1868, %v1847, 0
        %v1879 = vsel %vm1868, %v1848, 0
        %v1882 = vsel %vm1868, %v1849, 0
        %v1885 = vsel %vm1868, %v1850, 0
        %v1888 = vsel %vm1868, %v1851, 0
        %v1891 = vsel %vm1868, %v1852, 0
        %vm1893 = vcmask 1041408
        %v1895 = vsel %vm1893, %v1865, 0
        %1897 = vmatprep.subr.bf16.mxu0 0
        %1898 = vmatpush1.bf16.msra.mxu0 0
        %1899 = vmatprep.subr.bf16.mxu0 0
        %1900 = vmatpush1.bf16.msra.mxu0 0
        %1901 = vmatprep.subr.bf16.mxu0 0
        %1902 = vmatpush1.bf16.msra.mxu0 0
        %1903 = vmatprep.subr.bf16.mxu0 0
        %1904 = vmatpush1.bf16.msra.mxu0 0
        %1905 = vmatprep.subr.bf16.mxu0 0
        %1906 = vmatpush1.bf16.msra.mxu0 0
        %1907 = vmatprep.subr.bf16.mxu0 0
        %1908 = vmatpush1.bf16.msra.mxu0 %v1895
        %1909 = vmatprep.subr.bf16.mxu0 0
        %1910 = vmatpush1.bf16.msra.mxu0 %v1864
        %1911 = vmatprep.subr.bf16.mxu0 0
        %1912 = vmatpush1.bf16.msra.mxu0 %v1863
        %1913 = vmatprep.subr.bf16.mxu0 0
        %1914 = vmatpush2.bf16.msra.mxu0 0
        %1915 = vmatprep.subr.bf16.mxu0 0
        %1916 = vmatpush2.bf16.msra.mxu0 0
        %1917 = vmatprep.subr.bf16.mxu0 0
        %1918 = vmatpush2.bf16.msra.mxu0 0
        %1919 = vmatprep.subr.bf16.mxu0 0
        %1920 = vmatpush2.bf16.msra.mxu0 0
        %1921 = vmatprep.subr.bf16.mxu0 0
        %1922 = vmatpush2.bf16.msra.mxu0 0
        %1923 = vmatprep.subr.bf16.mxu0 0
        %1924 = vmatpush2.bf16.msra.mxu0 0
        %1925 = vmatprep.subr.bf16.mxu0 0
        %1926 = vmatpush2.bf16.msra.mxu0 0
        %1927 = vmatprep.subr.bf16.mxu0 0
        %1928 = vmatpush2.bf16.msra.mxu0 0
        %1929 = vmatprep.mubr.bf16.mxu0 0
        %1930 = vmatmul.mubr.bf16.gmra.mxu0 %v1870
        %v1931 = vpop.f32.mrf.mxu0
        %v1932 = vadd.f32 0.0, %v1931
        %v1933 = vpop.f32.mrf.mxu0
        %v1934 = vpop.f32.mrf.mxu0
        %v1935 = vadd.f32 0.0, %v1934
        %v1936 = vpop.f32.mrf.mxu0
        %1937 = vmatprep.mubr.bf16.mxu0 0
        %1938 = vmatmul.mubr.bf16.gmra.mxu0 %v1873
        %v1939 = vpop.f32.mrf.mxu0
        %v1940 = vadd.f32 0.0, %v1939
        %v1941 = vpop.f32.mrf.mxu0
        %v1942 = vpop.f32.mrf.mxu0
        %v1943 = vadd.f32 0.0, %v1942
        %v1944 = vpop.f32.mrf.mxu0
        %1945 = vmatprep.mubr.bf16.mxu0 0
        %1946 = vmatmul.mubr.bf16.gmra.mxu0 %v1876
        %v1947 = vpop.f32.mrf.mxu0
        %v1948 = vadd.f32 0.0, %v1947
        %v1949 = vpop.f32.mrf.mxu0
        %v1950 = vpop.f32.mrf.mxu0
        %v1951 = vadd.f32 0.0, %v1950
        %v1952 = vpop.f32.mrf.mxu0
        %1953 = vmatprep.mubr.bf16.mxu0 0
        %1954 = vmatmul.mubr.bf16.gmra.mxu0 %v1879
        %v1955 = vpop.f32.mrf.mxu0
        %v1956 = vadd.f32 0.0, %v1955
        %v1957 = vpop.f32.mrf.mxu0
        %v1958 = vpop.f32.mrf.mxu0
        %v1959 = vadd.f32 0.0, %v1958
        %v1960 = vpop.f32.mrf.mxu0
        %1961 = vmatprep.mubr.bf16.mxu0 0
        %1962 = vmatmul.mubr.bf16.gmra.mxu0 %v1882
        %v1963 = vpop.f32.mrf.mxu0
        %v1964 = vadd.f32 0.0, %v1963
        %v1965 = vpop.f32.mrf.mxu0
        %v1966 = vpop.f32.mrf.mxu0
        %v1967 = vadd.f32 0.0, %v1966
        %v1968 = vpop.f32.mrf.mxu0
        %1969 = vmatprep.mubr.bf16.mxu0 0
        %1970 = vmatmul.mubr.bf16.gmra.mxu0 %v1885
        %v1971 = vpop.f32.mrf.mxu0
        %v1972 = vadd.f32 0.0, %v1971
        %v1973 = vpop.f32.mrf.mxu0
        %v1974 = vpop.f32.mrf.mxu0
        %v1975 = vadd.f32 0.0, %v1974
        %v1976 = vpop.f32.mrf.mxu0
        %1977 = vmatprep.mubr.bf16.mxu0 0
        %1978 = vmatmul.mubr.bf16.gmra.mxu0 %v1888
        %v1979 = vpop.f32.mrf.mxu0
        %v1980 = vadd.f32 0.0, %v1979
        %v1981 = vpop.f32.mrf.mxu0
        %v1982 = vpop.f32.mrf.mxu0
        %v1983 = vadd.f32 0.0, %v1982
        %v1984 = vpop.f32.mrf.mxu0
        %1985 = vmatprep.mubr.bf16.mxu0 0
        %1986 = vmatmul.mubr.bf16.gmra.mxu0 %v1891
        %v1987 = vpop.f32.mrf.mxu0
        %v1988 = vadd.f32 0.0, %v1987
        %v1989 = vpop.f32.mrf.mxu0
        %v1990 = vpop.f32.mrf.mxu0
        %v1991 = vadd.f32 0.0, %v1990
        %v1992 = vpop.f32.mrf.mxu0
        %1993 = vdwg.mxu0
        %v1994 = vmax.f32 %v1932, 0.0
        %v1995 = vmax.f32 %v1935, 0.0
        %v1996 = vmax.f32 %v1940, 0.0
        %v1997 = vmax.f32 %v1943, 0.0
        %v1998 = vmax.f32 %v1948, 0.0
        %v1999 = vmax.f32 %v1951, 0.0
        %v2000 = vmax.f32 %v1956, 0.0
        %v2001 = vmax.f32 %v1959, 0.0
        %v2002 = vmax.f32 %v1964, 0.0
        %v2003 = vmax.f32 %v1967, 0.0
        %v2004 = vmax.f32 %v1972, 0.0
        %v2005 = vmax.f32 %v1975, 0.0
        %v2006 = vmax.f32 %v1980, 0.0
        %v2007 = vmax.f32 %v1983, 0.0
        %v2008 = vmax.f32 %v1988, 0.0
        %v2009 = vmax.f32 %v1991, 0.0
        %v2010 = vadd.f32 %v1994, %v1995
        %v2011 = vadd.f32 %v2010, %v1996
        %v2012 = vadd.f32 %v2011, %v1997
        %v2013 = vadd.f32 %v2012, %v1998
        %v2014 = vadd.f32 %v2013, %v1999
        %v2015 = vadd.f32 %v2014, %v2000
        %v2016 = vadd.f32 %v2015, %v2001
        %v2017 = vadd.f32 %v2016, %v2002
        %v2018 = vadd.f32 %v2017, %v2003
        %v2019 = vadd.f32 %v2018, %v2004
        %v2020 = vadd.f32 %v2019, %v2005
        %v2021 = vadd.f32 %v2020, %v2006
        %v2022 = vadd.f32 %v2021, %v2007
        %v2023 = vadd.f32 %v2022, %v2008
        %v2024 = vadd.f32 %v2023, %v2009
        %v2025 = vrot.slane %v2024, 4
        %v2026 = vadd.f32 %v2024, %v2025
        %v2027 = vrot.slane %v2026, 2
        %v2028 = vadd.f32 %v2026, %v2027
        %v2029 = vrot.slane %v2028, 1
        %v2030 = vadd.f32 %v2028, %v2029
        %v2031 = vmul.f32 %v1994, %v1994
        %v2032 = vmul.f32 %v1995, %v1995
        %v2033 = vmul.f32 %v1996, %v1996
        %v2034 = vmul.f32 %v1997, %v1997
        %v2035 = vmul.f32 %v1998, %v1998
        %v2036 = vmul.f32 %v1999, %v1999
        %v2037 = vmul.f32 %v2000, %v2000
        %v2038 = vmul.f32 %v2001, %v2001
        %v2039 = vmul.f32 %v2002, %v2002
        %v2040 = vmul.f32 %v2003, %v2003
        %v2041 = vmul.f32 %v2004, %v2004
        %v2042 = vmul.f32 %v2005, %v2005
        %v2043 = vmul.f32 %v2006, %v2006
        %v2044 = vmul.f32 %v2007, %v2007
        %v2045 = vmul.f32 %v2008, %v2008
        %v2046 = vmul.f32 %v2009, %v2009
        %v2047 = vadd.f32 %v2031, %v2032
        %v2048 = vadd.f32 %v2047, %v2033
        %v2049 = vadd.f32 %v2048, %v2034
        %v2050 = vadd.f32 %v2049, %v2035
        %v2051 = vadd.f32 %v2050, %v2036
        %v2052 = vadd.f32 %v2051, %v2037
        %v2053 = vadd.f32 %v2052, %v2038
        %v2054 = vadd.f32 %v2053, %v2039
        %v2055 = vadd.f32 %v2054, %v2040
        %v2056 = vadd.f32 %v2055, %v2041
        %v2057 = vadd.f32 %v2056, %v2042
        %v2058 = vadd.f32 %v2057, %v2043
        %v2059 = vadd.f32 %v2058, %v2044
        %v2060 = vadd.f32 %v2059, %v2045
        %v2061 = vadd.f32 %v2060, %v2046
        %v2062 = vrot.slane %v2061, 4
        %v2063 = vadd.f32 %v2061, %v2062
        %v2064 = vrot.slane %v2063, 2
        %v2065 = vadd.f32 %v2063, %v2064
        %v2066 = vrot.slane %v2065, 1
        %v2067 = vadd.f32 %v2065, %v2066
        %v2068 = vlaneseq
        %v2069 = vshrl.u32 %v2068, 7
        %vm2070 = vcmp.eq.s32.totalorder %v2069, 0
        %vm2071 = vcmp.eq.s32.totalorder %v2069, 1
        %v2072 = vsel %vm2071, %v2067, 0.0
        %v2073 = vsel %vm2070, %v2030, %v2072
        %2074 = vst [vmem:[%s190] sm:$0xff] %v2073
        %2075 = vxpose.xlu0.b32.start [1/16] %v1994, 128
        %2076 = vxpose.xlu0.b32.cont [2/16] %v1995, 128
        %2077 = vxpose.xlu0.b32.cont [3/16] %v1996, 128
        %2078 = vxpose.xlu0.b32.cont [4/16] %v1997, 128
        %2079 = vxpose.xlu0.b32.cont [5/16] %v1998, 128
        %2080 = vxpose.xlu0.b32.cont [6/16] %v1999, 128
        %2081 = vxpose.xlu0.b32.cont [7/16] %v2000, 128
        %2082 = vxpose.xlu0.b32.cont [8/16] %v2001, 128
        %2083 = vxpose.xlu0.b32.cont [9/16] %v2002, 128
        %2084 = vxpose.xlu0.b32.cont [10/16] %v2003, 128
        %2085 = vxpose.xlu0.b32.cont [11/16] %v2004, 128
        %2086 = vxpose.xlu0.b32.cont [12/16] %v2005, 128
        %2087 = vxpose.xlu0.b32.cont [13/16] %v2006, 128
        %2088 = vxpose.xlu0.b32.cont [14/16] %v2007, 128
        %2089 = vxpose.xlu0.b32.cont [15/16] %v2008, 128
        %2090 = vxpose.xlu0.b32.end [16/16] %v2009, 128
        %v2091 = vpop.trf.xlu0
        %v2092 = vpop.trf.xlu0
        %v2093 = vpop.trf.xlu0
        %v2094 = vpop.trf.xlu0
        %v2095 = vpop.trf.xlu0
        %v2096 = vpop.trf.xlu0
        %v2097 = vpop.trf.xlu0
        %v2098 = vpop.trf.xlu0
        %v2099 = vpop.trf.xlu0
        %v2100 = vpop.trf.xlu0
        %v2101 = vpop.trf.xlu0
        %v2102 = vpop.trf.xlu0
        %v2103 = vpop.trf.xlu0
        %v2104 = vpop.trf.xlu0
        %v2105 = vpop.trf.xlu0
        %v2106 = vpop.trf.xlu0
        %v2107 = vpack.c.bf16 %v2091, %v2091
        %2108 = vst [vmem:[%s183] sm:$0xf] %v2107
        %s2109 = sand.u32 %s90, 1
        %s2110 = scalar_lea.sflag [#allocation4], %s2109
        %s2111 = sand.u32 %s90, 1
        %s2112 = smul.addr %s2111, 4
        %s2113 = scalar_lea.vmem [#allocation3], %s2112
        %s2114 = sand.u32 %s118, 1
        %s2115 = scalar_lea.sflag [#allocation6], %s2114
        %s2116 = sand.u32 %s118, 1
        %s2117 = smul.addr %s2116, 8
        %s2118 = scalar_lea.vmem [#allocation5], %s2117
        // Predicated region
        $region29: #{tpu_custom_call.1} parent=27 // pred_check
          %p2119 = pneg %p100
        $region30: #{tpu_custom_call.1} parent=27 // pred_check_branch
          %2121 = sbr.rel (%p2119) target = $region32
        $region31: #{tpu_custom_call.1} parent=27 // pred_region
          %s2123 = ssub.s32 64, 64
          %2124 = vsyncadd %s2110, %s2123
          %s2125 = smul.addr %s25, 2
          %s2126 = sadd.s32 %s26, %s2125
          %s2127 = smul.addr %s2126, 64
          %s2128 = scalar_lea.hbm %s2, %s2127
          %s2130 = sshll.u32 %s2113, 4
          %s2131 = int_to_ptr.vmem [resolvable:$true] %s2130
          %2133 = dma.vmem_to_hbm [thread:$0]  %s2131, 64, %s2128, %s2110
        $region32: #{tpu_custom_call.1} parent=27 // pred_fallthru
          _
        // Predicated region
        $region33: #{tpu_custom_call.1} parent=27 // pred_check
          %p2134 = pneg %p128
        $region34: #{tpu_custom_call.1} parent=27 // pred_check_branch
          %2136 = sbr.rel (%p2134) target = $region36
        $region35: #{tpu_custom_call.1} parent=27 // pred_region
          %s2138 = ssub.s32 128, 128
          %2139 = vsyncadd %s2115, %s2138
          %s2140 = smul.addr %s25, 2
          %s2141 = sadd.s32 %s26, %s2140
          %s2142 = smul.addr %s2141, 128
          %s2143 = scalar_lea.hbm %s3, %s2142
          %s2145 = sshll.u32 %s2118, 4
          %s2146 = int_to_ptr.vmem [resolvable:$true] %s2145
          %2148 = dma.vmem_to_hbm [thread:$0]  %s2146, 128, %s2143, %s2115
        $region36: #{tpu_custom_call.1} parent=27 // pred_fallthru
          _
      $region28: #{tpu_custom_call.1} parent=5 // pred_fallthru
        _
      %p2149 = scmp.le.s32.totalorder 2, %s16
      // Predicated region
      $region37: #{tpu_custom_call.1} parent=5 // pred_check
        %p2150 = pneg %p2149
      $region38: #{tpu_custom_call.1} parent=5 // pred_check_branch
        %2152 = sbr.rel (%p2150) target = $region40
      $region39: #{tpu_custom_call.1} parent=5 // pred_region
        %s2153 = ssub.s32 %s16, 2
        // Predicated region
        $region41: #{tpu_custom_call.1} parent=39 // pred_check
          %p2154 = pneg %p106
        $region42: #{tpu_custom_call.1} parent=39 // pred_check_branch
          %2156 = sbr.rel (%p2154) target = $region44
        $region43: #{tpu_custom_call.1} parent=39 // pred_region
          %s2157 = sand.u32 %s91, 1
          %s2158 = scalar_lea.sflag [#allocation4], %s2157
          %s2159 = sand.u32 %s91, 1
          %s2160 = smul.addr %s2159, 4
          %s2161 = scalar_lea.vmem [#allocation3], %s2160
          %2162 = dma.done %s2158, 64
        $region44: #{tpu_custom_call.1} parent=39 // pred_fallthru
          _
        // Predicated region
        $region45: #{tpu_custom_call.1} parent=39 // pred_check
          %p2163 = pneg %p134
        $region46: #{tpu_custom_call.1} parent=39 // pred_check_branch
          %2165 = sbr.rel (%p2163) target = $region48
        $region47: #{tpu_custom_call.1} parent=39 // pred_region
          %s2166 = sand.u32 %s119, 1
          %s2167 = scalar_lea.sflag [#allocation6], %s2166
          %s2168 = sand.u32 %s119, 1
          %s2169 = smul.addr %s2168, 8
          %s2170 = scalar_lea.vmem [#allocation5], %s2169
          %2171 = dma.done %s2167, 128
        $region48: #{tpu_custom_call.1} parent=39 // pred_fallthru
          _
      $region40: #{tpu_custom_call.1} parent=5 // pred_fallthru
        _
    $region6: #{tpu_custom_call.1} parent=1 // loop_footer
      %s20 = sadd.s32 1, %s16
    $region7: #{tpu_custom_call.1} parent=1 // loop_footer_branch
      %15 = sbr.rel target = $region3
    $region8: #{tpu_custom_call.1} parent=1 // loop_exit
      _
    %2172 = vsyncpa [#allocation4], 1
    %s2173 = scalar_lea.sflag [#allocation4], 1
    %2174 = vsyncpa %s2173, 1
    %2175 = vsyncpa [#allocation6], 1
    %s2176 = scalar_lea.sflag [#allocation6], 1
    %2177 = vsyncpa %s2176, 1

</llo_original>
